<compile_context>
chip_gen: v5e
topology: v5e:2x2
jax: 0.10.0
libtpu: 0.0.40
codegen_flags: <defaults>
</compile_context>

<pallas_src>
import jax
import jax.numpy as jnp
from jax import lax
from jax.experimental import pallas as pl
from jax.experimental.pallas import tpu as pltpu


_VMEM_LIMIT_BYTES = 48 * 1024 * 1024   # < v7x's 64 MiB physical VMEM, > default scoped limits
_VMEM_BUDGET_BYTES = 40 * 1024 * 1024  # per-step residency target (leaves pipeline headroom)


def _round_up(x, m):
    return -(-x // m) * m


def _vmem_bytes_estimate(tb, s, e, t, hp):
    """Rough per-grid-step VMEM residency (bytes) for batch tile `tb`."""
    emb_blk = tb * s * e * 2                      # bf16 embeddings tile
    mask_blk = tb * s * 4                         # f32 mask tile
    out_blk = tb * hp * (s * 2 + e * 4)           # bf16 topic_weight + f32 topic_vec
    weights = (e * t + t * hp + e * e) * 2 + (t + hp + e) * 4
    # f32 intermediates: hidden, scores, softmax temps (~3x), ctx, tvec
    inter = tb * s * (t + hp) * 4 + 3 * tb * hp * s * 4 + 2 * tb * hp * e * 4
    return 2 * (emb_blk + mask_blk + out_blk) + 2 * weights + inter


def _pick_batch_tile(b, s, e, t, hp, block_b):
    """Largest divisor of B whose working set fits the VMEM budget.

    On single-TensorCore v5e/v6e bigger is strictly better (amortizes the ~0.35us
    per-grid-step overhead and fattens matmul M). On v7x (2 TensorCores, 64 MiB VMEM)
    pass block_b <= B//2 so the "parallel" grid axis can shard across both cores.
    """
    divisors = [d for d in range(1, b + 1) if b % d == 0]
    fitting = [d for d in divisors if _vmem_bytes_estimate(d, s, e, t, hp) <= _VMEM_BUDGET_BYTES]
    tb = max(fitting) if fitting else 1
    if block_b is not None:
        tb = min(tb, max(1, block_b))
        tb = max(d for d in divisors if d <= tb)
    return tb


def topic_kernel(emb_ref, mask_ref, w1t_ref, b1_ref, w2t_ref, b2_ref,
                 wft_ref, bf_ref, tvec_ref, tw_ref):
    """One batch tile; every matmul is a single (batched or big-M) MXU call."""
    tb, _, s = mask_ref.shape                 # (TB, 1, Sp)
    e = emb_ref.shape[-1]
    hp = w2t_ref.shape[-1]                    # head count padded to a multiple of 8

    emb2 = emb_ref[...]                       # (TB*Sp, E) bf16

    # Linear(E -> T) + tanh: one big-M MXU matmul, f32 accumulation (tanh on the EUP).
    hid = jnp.tanh(
        jnp.dot(emb2, w1t_ref[...], preferred_element_type=jnp.float32)
        + b1_ref[...])                                        # (TB*Sp, T) f32

    # Linear(T -> Hp): big-M (TB*Sp, T) @ (T, Hp); bias added while still 2-D.
    scores = (jnp.dot(hid.astype(jnp.bfloat16), w2t_ref[...],
                      preferred_element_type=jnp.float32)
              + b2_ref[...])                                  # (TB*Sp, Hp) f32

    # One small minor-dim transpose of the Hp-wide result (rides the XLU slot).
    logits = jnp.swapaxes(scores.reshape(tb, s, hp), 1, 2)    # (TB, Hp, Sp)

    # Masked softmax over S (lane axis), vectorized over all TB*Hp rows.
    is_pad = mask_ref[...] == 0.0                             # (TB, 1, Sp)
    masked = jnp.where(is_pad, -10000.0, logits)
    m = jnp.max(masked, axis=-1, keepdims=True)
    ex = jnp.exp(masked - m)
    denom = jnp.sum(ex, axis=-1, keepdims=True)
    # TODO(synk): switch to an exact divide if downstream needs rows to sum to exactly 1.
    sm = ex * pl.reciprocal(denom, approx=True)               # EUP reciprocal (free slot)
    tw = jnp.where(is_pad, 0.0, sm)                           # (TB, Hp, Sp) f32

    # ctx[b] = tw[b] @ emb[b]: batched (TB, Hp, Sp) x (TB, Sp, E) -> (TB, Hp, E).
    emb3 = emb2.reshape(tb, s, e)
    ctx = lax.dot_general(tw.astype(jnp.bfloat16), emb3,
                          dimension_numbers=(((2,), (1,)), ((0,), (0,))),
                          preferred_element_type=jnp.float32)

    # Final Linear(E -> E) over all TB*Hp rows in one big-M MXU call.
    tvec = (jnp.dot(ctx.reshape(tb * hp, e).astype(jnp.bfloat16), wft_ref[...],
                    preferred_element_type=jnp.float32)
            + bf_ref[...])                                    # (TB*Hp, E) f32

    # Lane/sublane-dense 2-D slab stores (no H<8 partial-sublane writes).
    tvec_ref[...] = tvec.astype(tvec_ref.dtype)
    tw_ref[...] = tw.reshape(tb * hp, s).astype(tw_ref.dtype)


def topic_layer_forward(emb, mask, params, *, block_b=None):
    """emb: [B, S, E] f32, mask: [B, S] (1 = valid, 0 = pad).

    Returns (topic_vec [B, H, E] f32, topic_weight [B, H, S] bf16).
    """
    B, S, E = emb.shape
    H, T = params["w2"].shape                 # (head_num, topic_dim)

    # Pad S and H to multiples of 8 so every in-kernel reshape is sublane-aligned and
    # the output slabs are dense; the mask covers padded positions, padded heads are
    # sliced off below.
    Sp = _round_up(S, 8)
    Hp = _round_up(H, 8)
    if Sp != S:
        emb = jnp.pad(emb, ((0, 0), (0, Sp - S), (0, 0)))
        mask = jnp.pad(mask, ((0, 0), (0, Sp - S)))
    # TODO(synk): for production embedding_dim (e.g. 300) also pad E to a multiple of 128
    # so the topic_vec stores are full-lane unmasked vst.

    TB = _pick_batch_tile(B, Sp, E, T, Hp, block_b)
    grid = (B // TB,)

    # bf16 MXU operands (f32 accumulation inside the kernel); biases stay f32.
    emb2d = emb.astype(jnp.bfloat16).reshape(B * Sp, E)
    mask3 = mask.reshape(B, 1, Sp).astype(jnp.float32)
    w1t = params["w1"].T.astype(jnp.bfloat16)                              # (E, T)
    b1 = params["b1"].reshape(1, T).astype(jnp.float32)
    w2t = jnp.zeros((T, Hp), jnp.bfloat16).at[:, :H].set(
        params["w2"].T.astype(jnp.bfloat16))                               # (T, Hp)
    b2 = jnp.zeros((1, Hp), jnp.float32).at[:, :H].set(
        params["b2"].astype(jnp.float32))                                  # (1, Hp)
    wft = params["wf"].T.astype(jnp.bfloat16)                              # (E, E)
    bf = params["bf"].reshape(1, E).astype(jnp.float32)

    def run(weight_mode):
        def const_spec(shape):
            # Grid-invariant operand (weights/biases): same block every step.
            if weight_mode is None:
                return pl.BlockSpec(shape, lambda b: (0,) * len(shape))
            return pl.BlockSpec(shape, lambda b: (0,) * len(shape),
                                pipeline_mode=weight_mode)

        grid_spec = pltpu.PrefetchScalarGridSpec(
            num_scalar_prefetch=0,
            grid=grid,
            in_specs=[
                pl.BlockSpec((TB * Sp, E), lambda b: (b, 0)),      # embeddings (bf16)
                pl.BlockSpec((TB, 1, Sp), lambda b: (b, 0, 0)),    # mask (f32)
                const_spec((E, T)), const_spec((1, T)),
                const_spec((T, Hp)), const_spec((1, Hp)),
                const_spec((E, E)), const_spec((1, E)),
            ],
            out_specs=[
                pl.BlockSpec((TB * Hp, E), lambda b: (b, 0)),      # topic_vec slab
                pl.BlockSpec((TB * Hp, Sp), lambda b: (b, 0)),     # topic_weight slab
            ],
        )
        return pl.pallas_call(
            topic_kernel,
            out_shape=(
                jax.ShapeDtypeStruct((B * Hp, E), jnp.float32),
                jax.ShapeDtypeStruct((B * Hp, Sp), jnp.bfloat16),
            ),
            grid_spec=grid_spec,
            compiler_params=pltpu.CompilerParams(
                dimension_semantics=("parallel",),
                vmem_limit_bytes=_VMEM_LIMIT_BYTES),
        )(emb2d, mask3, w1t, b1, w2t, b2, wft, bf)

    try:
        # Grid-invariant weights/biases single-buffered: same block every step, so
        # double-buffering only wastes VMEM (matters most on v7x's 64 MiB).
        tvec2d, tw2d = run(pl.Buffered(1))
    except Exception:
        # pipeline_mode / Buffered(1) not accepted by this jax build: default buffering.
        tvec2d, tw2d = run(None)

    topic_vec = tvec2d.reshape(B, Hp, E)[:, :H, :]
    topic_weight = tw2d.reshape(B, Hp, Sp)[:, :H, :S]
    return topic_vec, topic_weight


def topic_layer_reference(emb, mask, params):
    """Pure-JAX f32 reference mirroring the PyTorch forward (base variant)."""
    h = jnp.tanh(jnp.einsum("bse,te->bst", emb, params["w1"]) + params["b1"])
    scores = jnp.einsum("bst,ht->bsh", h, params["w2"]) + params["b2"]
    logits = jnp.swapaxes(scores, 1, 2)                     # [B, H, S]
    is_pad = (mask == 0)[:, None, :]                        # [B, 1, S]
    masked = jnp.where(is_pad, -10000.0, logits)
    sm = jax.nn.softmax(masked, axis=-1)
    tw = jnp.where(is_pad, 0.0, sm)
    ctx = jnp.einsum("bhs,bse->bhe", tw, emb)
    tvec = jnp.einsum("bhe,fe->bhf", ctx, params["wf"]) + params["bf"]
    return tvec, tw


if __name__ == "__main__":
    # Small deterministic config consistent with the module's forward.
    B, S, E = 8, 12, 32         # batch, sequence length, embedding_dim
    H, HD = 4, 4                # head_num, head_dim
    TOPIC_DIM = H * HD

    key = jax.random.PRNGKey(0)
    k_emb, k_w1, k_b1, k_w2, k_b2, k_wf, k_bf = jax.random.split(key, 7)

    emb = jax.random.normal(k_emb, (B, S, E), dtype=jnp.float32)
    # mask: 1 = valid token, 0 = padding (variable lengths per example)
    lengths = jnp.array([S, 5, 12, 3, 9, 6, 1, 10])
    mask = (jnp.arange(S)[None, :] < lengths[:, None]).astype(jnp.float32)

    params = {
        "w1": 0.1 * jax.random.normal(k_w1, (TOPIC_DIM, E), dtype=jnp.float32),
        "b1": 0.1 * jax.random.normal(k_b1, (TOPIC_DIM,), dtype=jnp.float32),
        "w2": 0.1 * jax.random.normal(k_w2, (H, TOPIC_DIM), dtype=jnp.float32),
        "b2": 0.1 * jax.random.normal(k_b2, (H,), dtype=jnp.float32),
        "wf": 0.1 * jax.random.normal(k_wf, (E, E), dtype=jnp.float32),
        "bf": 0.1 * jax.random.normal(k_bf, (E,), dtype=jnp.float32),
    }

    # block_b=4 -> a 2-step grid, exercising the pipeline and invariant-weight specs.
    topic_vec, topic_weight = topic_layer_forward(emb, mask, params, block_b=4)
    topic_vec = jax.block_until_ready(topic_vec)
    topic_weight = jax.block_until_ready(topic_weight)

    ref_vec, ref_weight = topic_layer_reference(emb, mask, params)
    assert topic_vec.shape == (B, H, E) and topic_weight.shape == (B, H, S)
    # bf16 MXU operands / bf16 topic_weight output with f32 accumulation -> loosened
    # tolerances vs. the pure-f32 reference.
    assert jnp.allclose(topic_vec, ref_vec, atol=2e-2, rtol=2e-2)
    assert jnp.allclose(topic_weight.astype(jnp.float32), ref_weight, atol=2e-2, rtol=2e-2)

    print("KERNEL_OK")
</pallas_src>

<mosaic_0001>
module attributes {stable_mosaic.version = 11 : i64} {
  func.func @topic_kernel(%arg0: i32, %arg1: memref<64x32xbf16, #tpu.memory_space<vmem>>, %arg2: memref<4x1x16xf32, #tpu.memory_space<vmem>>, %arg3: memref<32x16xbf16, #tpu.memory_space<vmem>>, %arg4: memref<1x16xf32, #tpu.memory_space<vmem>>, %arg5: memref<16x8xbf16, #tpu.memory_space<vmem>>, %arg6: memref<1x8xf32, #tpu.memory_space<vmem>>, %arg7: memref<32x32xbf16, #tpu.memory_space<vmem>>, %arg8: memref<1x32xf32, #tpu.memory_space<vmem>>, %arg9: memref<32x32xf32, #tpu.memory_space<vmem>>, %arg10: memref<32x16xbf16, #tpu.memory_space<vmem>>) attributes {dimension_semantics = [#tpu.dimension_semantics<parallel>], iteration_bounds = array<i64: 2>, scalar_prefetch = 0 : i64, scratch_operands = 0 : i64, tpu.core_type = #tpu.core_type<tc>, window_params = [{transform_indices = @transform_0, window_bounds = array<i64: 64, 32>}, {transform_indices = @transform_1, window_bounds = array<i64: 4, 1, 16>}, {pipeline_mode = #tpu.pipeline_mode<synchronous>, transform_indices = @transform_2, window_bounds = array<i64: 32, 16>}, {pipeline_mode = #tpu.pipeline_mode<synchronous>, transform_indices = @transform_3, window_bounds = array<i64: 1, 16>}, {pipeline_mode = #tpu.pipeline_mode<synchronous>, transform_indices = @transform_4, window_bounds = array<i64: 16, 8>}, {pipeline_mode = #tpu.pipeline_mode<synchronous>, transform_indices = @transform_5, window_bounds = array<i64: 1, 8>}, {pipeline_mode = #tpu.pipeline_mode<synchronous>, transform_indices = @transform_6, window_bounds = array<i64: 32, 32>}, {pipeline_mode = #tpu.pipeline_mode<synchronous>, transform_indices = @transform_7, window_bounds = array<i64: 1, 32>}, {transform_indices = @transform_8, window_bounds = array<i64: 32, 32>}, {transform_indices = @transform_9, window_bounds = array<i64: 32, 16>}]} {
    %c0 = arith.constant 0 : index
    %c0_0 = arith.constant 0 : index
    %0 = vector.load %arg1[%c0, %c0_0] : memref<64x32xbf16, #tpu.memory_space<vmem>>, vector<64x32xbf16>
    %c0_1 = arith.constant 0 : index
    %c0_2 = arith.constant 0 : index
    %1 = vector.load %arg3[%c0_1, %c0_2] : memref<32x16xbf16, #tpu.memory_space<vmem>>, vector<32x16xbf16>
    %cst = arith.constant dense<0.000000e+00> : vector<64x16xf32>
    %2 = tpu.matmul %0, %1, %cst {dimension_numbers = #tpu.dot_dimension_numbers<[1], [0], [0], [1], [0, 0, 1, 1], [], []>} : vector<64x32xbf16>, vector<32x16xbf16>, vector<64x16xf32> -> vector<64x16xf32>
    %c0_3 = arith.constant 0 : index
    %c0_4 = arith.constant 0 : index
    %3 = vector.load %arg4[%c0_3, %c0_4] : memref<1x16xf32, #tpu.memory_space<vmem>>, vector<1x16xf32>
    %4 = vector.broadcast %3 : vector<1x16xf32> to vector<64x16xf32>
    %5 = arith.addf %2, %4 : vector<64x16xf32>
    %6 = math.tanh %5 : vector<64x16xf32>
    %7 = arith.truncf %6 : vector<64x16xf32> to vector<64x16xbf16>
    %c0_5 = arith.constant 0 : index
    %c0_6 = arith.constant 0 : index
    %8 = vector.load %arg5[%c0_5, %c0_6] : memref<16x8xbf16, #tpu.memory_space<vmem>>, vector<16x8xbf16>
    %cst_7 = arith.constant dense<0.000000e+00> : vector<64x8xf32>
    %9 = tpu.matmul %7, %8, %cst_7 {dimension_numbers = #tpu.dot_dimension_numbers<[1], [0], [0], [1], [0, 0, 1, 1], [], []>} : vector<64x16xbf16>, vector<16x8xbf16>, vector<64x8xf32> -> vector<64x8xf32>
    %c0_8 = arith.constant 0 : index
    %c0_9 = arith.constant 0 : index
    %10 = vector.load %arg6[%c0_8, %c0_9] : memref<1x8xf32, #tpu.memory_space<vmem>>, vector<1x8xf32>
    %11 = vector.broadcast %10 : vector<1x8xf32> to vector<64x8xf32>
    %12 = arith.addf %9, %11 : vector<64x8xf32>
    %13 = vector.shape_cast %12 : vector<64x8xf32> to vector<4x16x8xf32>
    %14 = tpu.transpose %13, [0, 2, 1] : vector<4x16x8xf32> -> vector<4x8x16xf32>
    %c0_10 = arith.constant 0 : index
    %c0_11 = arith.constant 0 : index
    %c0_12 = arith.constant 0 : index
    %15 = vector.load %arg2[%c0_10, %c0_11, %c0_12] : memref<4x1x16xf32, #tpu.memory_space<vmem>>, vector<4x1x16xf32>
    %cst_13 = arith.constant 0.000000e+00 : f32
    %16 = vector.broadcast %cst_13 : f32 to vector<4x1x16xf32>
    %17 = arith.cmpf oeq, %15, %16 : vector<4x1x16xf32>
    %cst_14 = arith.constant -1.000000e+04 : f32
    %18 = vector.shape_cast %17 : vector<4x1x16xi1> to vector<4x1x16xi1>
    %19 = vector.broadcast %18 : vector<4x1x16xi1> to vector<4x8x16xi1>
    %20 = vector.broadcast %cst_14 : f32 to vector<4x8x16xf32>
    %21 = arith.select %19, %20, %14 : vector<4x8x16xi1>, vector<4x8x16xf32>
    %cst_15 = arith.constant dense<0xFF800000> : vector<4x8xf32>
    %22 = vector.multi_reduction <maximumf>, %21, %cst_15 [2] : vector<4x8x16xf32> to vector<4x8xf32>
    %23 = vector.shape_cast %22 : vector<4x8xf32> to vector<4x8x1xf32>
    %24 = vector.broadcast %23 : vector<4x8x1xf32> to vector<4x8x16xf32>
    %25 = arith.subf %21, %24 : vector<4x8x16xf32>
    %26 = math.exp %25 : vector<4x8x16xf32>
    %cst_16 = arith.constant dense<0.000000e+00> : vector<4x8xf32>
    %27 = vector.multi_reduction <add>, %26, %cst_16 [2] : vector<4x8x16xf32> to vector<4x8xf32>
    %28 = vector.shape_cast %27 : vector<4x8xf32> to vector<4x8x1xf32>
    %29 = tpu.reciprocal %28 {approx = true} : vector<4x8x1xf32> -> vector<4x8x1xf32>
    %30 = vector.broadcast %29 : vector<4x8x1xf32> to vector<4x8x16xf32>
    %31 = arith.mulf %26, %30 : vector<4x8x16xf32>
    %cst_17 = arith.constant 0.000000e+00 : f32
    %32 = vector.shape_cast %17 : vector<4x1x16xi1> to vector<4x1x16xi1>
    %33 = vector.broadcast %32 : vector<4x1x16xi1> to vector<4x8x16xi1>
    %34 = vector.broadcast %cst_17 : f32 to vector<4x8x16xf32>
    %35 = arith.select %33, %34, %31 : vector<4x8x16xi1>, vector<4x8x16xf32>
    %36 = vector.shape_cast %0 : vector<64x32xbf16> to vector<4x16x32xbf16>
    %37 = arith.truncf %35 : vector<4x8x16xf32> to vector<4x8x16xbf16>
    %cst_18 = arith.constant dense<0.000000e+00> : vector<4x8x32xf32>
    %38 = tpu.matmul %37, %36, %cst_18 {dimension_numbers = #tpu.dot_dimension_numbers<[2], [1], [1], [2], [0, 0, 0, 1, 1, 2], [0], [0]>} : vector<4x8x16xbf16>, vector<4x16x32xbf16>, vector<4x8x32xf32> -> vector<4x8x32xf32>
    %39 = vector.shape_cast %38 : vector<4x8x32xf32> to vector<32x32xf32>
    %40 = arith.truncf %39 : vector<32x32xf32> to vector<32x32xbf16>
    %c0_19 = arith.constant 0 : index
    %c0_20 = arith.constant 0 : index
    %41 = vector.load %arg7[%c0_19, %c0_20] : memref<32x32xbf16, #tpu.memory_space<vmem>>, vector<32x32xbf16>
    %cst_21 = arith.constant dense<0.000000e+00> : vector<32x32xf32>
    %42 = tpu.matmul %40, %41, %cst_21 {dimension_numbers = #tpu.dot_dimension_numbers<[1], [0], [0], [1], [0, 0, 1, 1], [], []>} : vector<32x32xbf16>, vector<32x32xbf16>, vector<32x32xf32> -> vector<32x32xf32>
    %c0_22 = arith.constant 0 : index
    %c0_23 = arith.constant 0 : index
    %43 = vector.load %arg8[%c0_22, %c0_23] : memref<1x32xf32, #tpu.memory_space<vmem>>, vector<1x32xf32>
    %44 = vector.broadcast %43 : vector<1x32xf32> to vector<32x32xf32>
    %45 = arith.addf %42, %44 : vector<32x32xf32>
    %c0_24 = arith.constant 0 : index
    %c0_25 = arith.constant 0 : index
    %46 = vector.load %arg9[%c0_24, %c0_25] : memref<32x32xf32, #tpu.memory_space<vmem>>, vector<32x32xf32>
    tpu.vector_store %arg9[%c0_24, %c0_25], %45 {strides = array<i32>} : memref<32x32xf32, #tpu.memory_space<vmem>>, vector<32x32xf32>,
    %47 = vector.shape_cast %35 : vector<4x8x16xf32> to vector<32x16xf32>
    %48 = arith.truncf %47 : vector<32x16xf32> to vector<32x16xbf16>
    %c0_26 = arith.constant 0 : index
    %c0_27 = arith.constant 0 : index
    %49 = vector.load %arg10[%c0_26, %c0_27] : memref<32x16xbf16, #tpu.memory_space<vmem>>, vector<32x16xbf16>
    tpu.vector_store %arg10[%c0_26, %c0_27], %48 {strides = array<i32>} : memref<32x16xbf16, #tpu.memory_space<vmem>>, vector<32x16xbf16>,
    return
  }
  func.func @transform_0(%arg0: i32) -> (i32, i32) {
    %c0_i32 = arith.constant 0 : i32
    %c0_i32_0 = arith.constant 0 : i32
    return %arg0, %c0_i32 : i32, i32
  }
  func.func @transform_1(%arg0: i32) -> (i32, i32, i32) {
    %c0_i32 = arith.constant 0 : i32
    %c0_i32_0 = arith.constant 0 : i32
    %c0_i32_1 = arith.constant 0 : i32
    return %arg0, %c0_i32, %c0_i32_0 : i32, i32, i32
  }
  func.func @transform_2(%arg0: i32) -> (i32, i32) {
    %c0_i32 = arith.constant 0 : i32
    %c0_i32_0 = arith.constant 0 : i32
    %c0_i32_1 = arith.constant 0 : i32
    return %c0_i32, %c0_i32_0 : i32, i32
  }
  func.func @transform_3(%arg0: i32) -> (i32, i32) {
    %c0_i32 = arith.constant 0 : i32
    %c0_i32_0 = arith.constant 0 : i32
    %c0_i32_1 = arith.constant 0 : i32
    return %c0_i32, %c0_i32_0 : i32, i32
  }
  func.func @transform_4(%arg0: i32) -> (i32, i32) {
    %c0_i32 = arith.constant 0 : i32
    %c0_i32_0 = arith.constant 0 : i32
    %c0_i32_1 = arith.constant 0 : i32
    return %c0_i32, %c0_i32_0 : i32, i32
  }
  func.func @transform_5(%arg0: i32) -> (i32, i32) {
    %c0_i32 = arith.constant 0 : i32
    %c0_i32_0 = arith.constant 0 : i32
    %c0_i32_1 = arith.constant 0 : i32
    return %c0_i32, %c0_i32_0 : i32, i32
  }
  func.func @transform_6(%arg0: i32) -> (i32, i32) {
    %c0_i32 = arith.constant 0 : i32
    %c0_i32_0 = arith.constant 0 : i32
    %c0_i32_1 = arith.constant 0 : i32
    return %c0_i32, %c0_i32_0 : i32, i32
  }
  func.func @transform_7(%arg0: i32) -> (i32, i32) {
    %c0_i32 = arith.constant 0 : i32
    %c0_i32_0 = arith.constant 0 : i32
    %c0_i32_1 = arith.constant 0 : i32
    return %c0_i32, %c0_i32_0 : i32, i32
  }
  func.func @transform_8(%arg0: i32) -> (i32, i32) {
    %c0_i32 = arith.constant 0 : i32
    %c0_i32_0 = arith.constant 0 : i32
    return %arg0, %c0_i32 : i32, i32
  }
  func.func @transform_9(%arg0: i32) -> (i32, i32) {
    %c0_i32 = arith.constant 0 : i32
    %c0_i32_0 = arith.constant 0 : i32
    return %arg0, %c0_i32 : i32, i32
  }
}

module attributes {stable_mosaic.version = 11 : i64} {
  func.func @topic_kernel(%arg0: i32, %arg1: memref<64x32xbf16, #tpu.memory_space<vmem>>, %arg2: memref<4x1x16xf32, #tpu.memory_space<vmem>>, %arg3: memref<32x16xbf16, #tpu.memory_space<vmem>>, %arg4: memref<1x16xf32, #tpu.memory_space<vmem>>, %arg5: memref<16x8xbf16, #tpu.memory_space<vmem>>, %arg6: memref<1x8xf32, #tpu.memory_space<vmem>>, %arg7: memref<32x32xbf16, #tpu.memory_space<vmem>>, %arg8: memref<1x32xf32, #tpu.memory_space<vmem>>, %arg9: memref<32x32xf32, #tpu.memory_space<vmem>>, %arg10: memref<32x16xbf16, #tpu.memory_space<vmem>>) attributes {dimension_semantics = [#tpu.dimension_semantics<parallel>], iteration_bounds = array<i64: 2>, scalar_prefetch = 0 : i64, scratch_operands = 0 : i64, tpu.core_type = #tpu.core_type<tc>, window_params = [{transform_indices = @transform_0, window_bounds = array<i64: 64, 32>}, {transform_indices = @transform_1, window_bounds = array<i64: 4, 1, 16>}, {pipeline_mode = #tpu.pipeline_mode<synchronous>, transform_indices = @transform_2, window_bounds = array<i64: 32, 16>}, {pipeline_mode = #tpu.pipeline_mode<synchronous>, transform_indices = @transform_3, window_bounds = array<i64: 1, 16>}, {pipeline_mode = #tpu.pipeline_mode<synchronous>, transform_indices = @transform_4, window_bounds = array<i64: 16, 8>}, {pipeline_mode = #tpu.pipeline_mode<synchronous>, transform_indices = @transform_5, window_bounds = array<i64: 1, 8>}, {pipeline_mode = #tpu.pipeline_mode<synchronous>, transform_indices = @transform_6, window_bounds = array<i64: 32, 32>}, {pipeline_mode = #tpu.pipeline_mode<synchronous>, transform_indices = @transform_7, window_bounds = array<i64: 1, 32>}, {transform_indices = @transform_8, window_bounds = array<i64: 32, 32>}, {transform_indices = @transform_9, window_bounds = array<i64: 32, 16>}]} {
    %c0 = arith.constant 0 : index
    %c0_0 = arith.constant 0 : index
    %0 = vector.load %arg1[%c0, %c0_0] : memref<64x32xbf16, #tpu.memory_space<vmem>>, vector<64x32xbf16>
    %c0_1 = arith.constant 0 : index
    %c0_2 = arith.constant 0 : index
    %1 = vector.load %arg3[%c0_1, %c0_2] : memref<32x16xbf16, #tpu.memory_space<vmem>>, vector<32x16xbf16>
    %cst = arith.constant dense<0.000000e+00> : vector<64x16xf32>
    %2 = tpu.matmul %0, %1, %cst {dimension_numbers = #tpu.dot_dimension_numbers<[1], [0], [0], [1], [0, 0, 1, 1], [], []>} : vector<64x32xbf16>, vector<32x16xbf16>, vector<64x16xf32> -> vector<64x16xf32>
    %c0_3 = arith.constant 0 : index
    %c0_4 = arith.constant 0 : index
    %3 = vector.load %arg4[%c0_3, %c0_4] : memref<1x16xf32, #tpu.memory_space<vmem>>, vector<1x16xf32>
    %4 = vector.broadcast %3 : vector<1x16xf32> to vector<64x16xf32>
    %5 = arith.addf %2, %4 : vector<64x16xf32>
    %6 = math.tanh %5 : vector<64x16xf32>
    %7 = arith.truncf %6 : vector<64x16xf32> to vector<64x16xbf16>
    %c0_5 = arith.constant 0 : index
    %c0_6 = arith.constant 0 : index
    %8 = vector.load %arg5[%c0_5, %c0_6] : memref<16x8xbf16, #tpu.memory_space<vmem>>, vector<16x8xbf16>
    %cst_7 = arith.constant dense<0.000000e+00> : vector<64x8xf32>
    %9 = tpu.matmul %7, %8, %cst_7 {dimension_numbers = #tpu.dot_dimension_numbers<[1], [0], [0], [1], [0, 0, 1, 1], [], []>} : vector<64x16xbf16>, vector<16x8xbf16>, vector<64x8xf32> -> vector<64x8xf32>
    %c0_8 = arith.constant 0 : index
    %c0_9 = arith.constant 0 : index
    %10 = vector.load %arg6[%c0_8, %c0_9] : memref<1x8xf32, #tpu.memory_space<vmem>>, vector<1x8xf32>
    %11 = vector.broadcast %10 : vector<1x8xf32> to vector<64x8xf32>
    %12 = arith.addf %9, %11 : vector<64x8xf32>
    %13 = vector.shape_cast %12 : vector<64x8xf32> to vector<4x16x8xf32>
    %14 = tpu.transpose %13, [0, 2, 1] : vector<4x16x8xf32> -> vector<4x8x16xf32>
    %c0_10 = arith.constant 0 : index
    %c0_11 = arith.constant 0 : index
    %c0_12 = arith.constant 0 : index
    %15 = vector.load %arg2[%c0_10, %c0_11, %c0_12] : memref<4x1x16xf32, #tpu.memory_space<vmem>>, vector<4x1x16xf32>
    %cst_13 = arith.constant 0.000000e+00 : f32
    %16 = vector.broadcast %cst_13 : f32 to vector<4x1x16xf32>
    %17 = arith.cmpf oeq, %15, %16 : vector<4x1x16xf32>
    %cst_14 = arith.constant -1.000000e+04 : f32
    %18 = vector.shape_cast %17 : vector<4x1x16xi1> to vector<4x1x16xi1>
    %19 = vector.broadcast %18 : vector<4x1x16xi1> to vector<4x8x16xi1>
    %20 = vector.broadcast %cst_14 : f32 to vector<4x8x16xf32>
    %21 = arith.select %19, %20, %14 : vector<4x8x16xi1>, vector<4x8x16xf32>
    %cst_15 = arith.constant dense<0xFF800000> : vector<4x8xf32>
    %22 = vector.multi_reduction <maximumf>, %21, %cst_15 [2] : vector<4x8x16xf32> to vector<4x8xf32>
    %23 = vector.shape_cast %22 : vector<4x8xf32> to vector<4x8x1xf32>
    %24 = vector.broadcast %23 : vector<4x8x1xf32> to vector<4x8x16xf32>
    %25 = arith.subf %21, %24 : vector<4x8x16xf32>
    %26 = math.exp %25 : vector<4x8x16xf32>
    %cst_16 = arith.constant dense<0.000000e+00> : vector<4x8xf32>
    %27 = vector.multi_reduction <add>, %26, %cst_16 [2] : vector<4x8x16xf32> to vector<4x8xf32>
    %28 = vector.shape_cast %27 : vector<4x8xf32> to vector<4x8x1xf32>
    %29 = tpu.reciprocal %28 {approx = true} : vector<4x8x1xf32> -> vector<4x8x1xf32>
    %30 = vector.broadcast %29 : vector<4x8x1xf32> to vector<4x8x16xf32>
    %31 = arith.mulf %26, %30 : vector<4x8x16xf32>
    %cst_17 = arith.constant 0.000000e+00 : f32
    %32 = vector.shape_cast %17 : vector<4x1x16xi1> to vector<4x1x16xi1>
    %33 = vector.broadcast %32 : vector<4x1x16xi1> to vector<4x8x16xi1>
    %34 = vector.broadcast %cst_17 : f32 to vector<4x8x16xf32>
    %35 = arith.select %33, %34, %31 : vector<4x8x16xi1>, vector<4x8x16xf32>
    %36 = vector.shape_cast %0 : vector<64x32xbf16> to vector<4x16x32xbf16>
    %37 = arith.truncf %35 : vector<4x8x16xf32> to vector<4x8x16xbf16>
    %cst_18 = arith.constant dense<0.000000e+00> : vector<4x8x32xf32>
    %38 = tpu.matmul %37, %36, %cst_18 {dimension_numbers = #tpu.dot_dimension_numbers<[2], [1], [1], [2], [0, 0, 0, 1, 1, 2], [0], [0]>} : vector<4x8x16xbf16>, vector<4x16x32xbf16>, vector<4x8x32xf32> -> vector<4x8x32xf32>
    %39 = vector.shape_cast %38 : vector<4x8x32xf32> to vector<32x32xf32>
    %40 = arith.truncf %39 : vector<32x32xf32> to vector<32x32xbf16>
    %c0_19 = arith.constant 0 : index
    %c0_20 = arith.constant 0 : index
    %41 = vector.load %arg7[%c0_19, %c0_20] : memref<32x32xbf16, #tpu.memory_space<vmem>>, vector<32x32xbf16>
    %cst_21 = arith.constant dense<0.000000e+00> : vector<32x32xf32>
    %42 = tpu.matmul %40, %41, %cst_21 {dimension_numbers = #tpu.dot_dimension_numbers<[1], [0], [0], [1], [0, 0, 1, 1], [], []>} : vector<32x32xbf16>, vector<32x32xbf16>, vector<32x32xf32> -> vector<32x32xf32>
    %c0_22 = arith.constant 0 : index
    %c0_23 = arith.constant 0 : index
    %43 = vector.load %arg8[%c0_22, %c0_23] : memref<1x32xf32, #tpu.memory_space<vmem>>, vector<1x32xf32>
    %44 = vector.broadcast %43 : vector<1x32xf32> to vector<32x32xf32>
    %45 = arith.addf %42, %44 : vector<32x32xf32>
    %c0_24 = arith.constant 0 : index
    %c0_25 = arith.constant 0 : index
    %46 = vector.load %arg9[%c0_24, %c0_25] : memref<32x32xf32, #tpu.memory_space<vmem>>, vector<32x32xf32>
    tpu.vector_store %arg9[%c0_24, %c0_25], %45 {strides = array<i32>} : memref<32x32xf32, #tpu.memory_space<vmem>>, vector<32x32xf32>,
    %47 = vector.shape_cast %35 : vector<4x8x16xf32> to vector<32x16xf32>
    %48 = arith.truncf %47 : vector<32x16xf32> to vector<32x16xbf16>
    %c0_26 = arith.constant 0 : index
    %c0_27 = arith.constant 0 : index
    %49 = vector.load %arg10[%c0_26, %c0_27] : memref<32x16xbf16, #tpu.memory_space<vmem>>, vector<32x16xbf16>
    tpu.vector_store %arg10[%c0_26, %c0_27], %48 {strides = array<i32>} : memref<32x16xbf16, #tpu.memory_space<vmem>>, vector<32x16xbf16>,
    return
  }
  func.func @transform_0(%arg0: i32) -> (i32, i32) {
    %c0_i32 = arith.constant 0 : i32
    %c0_i32_0 = arith.constant 0 : i32
    return %arg0, %c0_i32 : i32, i32
  }
  func.func @transform_1(%arg0: i32) -> (i32, i32, i32) {
    %c0_i32 = arith.constant 0 : i32
    %c0_i32_0 = arith.constant 0 : i32
    %c0_i32_1 = arith.constant 0 : i32
    return %arg0, %c0_i32, %c0_i32_0 : i32, i32, i32
  }
  func.func @transform_2(%arg0: i32) -> (i32, i32) {
    %c0_i32 = arith.constant 0 : i32
    %c0_i32_0 = arith.constant 0 : i32
    %c0_i32_1 = arith.constant 0 : i32
    return %c0_i32, %c0_i32_0 : i32, i32
  }
  func.func @transform_3(%arg0: i32) -> (i32, i32) {
    %c0_i32 = arith.constant 0 : i32
    %c0_i32_0 = arith.constant 0 : i32
    %c0_i32_1 = arith.constant 0 : i32
    return %c0_i32, %c0_i32_0 : i32, i32
  }
  func.func @transform_4(%arg0: i32) -> (i32, i32) {
    %c0_i32 = arith.constant 0 : i32
    %c0_i32_0 = arith.constant 0 : i32
    %c0_i32_1 = arith.constant 0 : i32
    return %c0_i32, %c0_i32_0 : i32, i32
  }
  func.func @transform_5(%arg0: i32) -> (i32, i32) {
    %c0_i32 = arith.constant 0 : i32
    %c0_i32_0 = arith.constant 0 : i32
    %c0_i32_1 = arith.constant 0 : i32
    return %c0_i32, %c0_i32_0 : i32, i32
  }
  func.func @transform_6(%arg0: i32) -> (i32, i32) {
    %c0_i32 = arith.constant 0 : i32
    %c0_i32_0 = arith.constant 0 : i32
    %c0_i32_1 = arith.constant 0 : i32
    return %c0_i32, %c0_i32_0 : i32, i32
  }
  func.func @transform_7(%arg0: i32) -> (i32, i32) {
    %c0_i32 = arith.constant 0 : i32
    %c0_i32_0 = arith.constant 0 : i32
    %c0_i32_1 = arith.constant 0 : i32
    return %c0_i32, %c0_i32_0 : i32, i32
  }
  func.func @transform_8(%arg0: i32) -> (i32, i32) {
    %c0_i32 = arith.constant 0 : i32
    %c0_i32_0 = arith.constant 0 : i32
    return %arg0, %c0_i32 : i32, i32
  }
  func.func @transform_9(%arg0: i32) -> (i32, i32) {
    %c0_i32 = arith.constant 0 : i32
    %c0_i32_0 = arith.constant 0 : i32
    return %arg0, %c0_i32 : i32, i32
  }
}

</mosaic_0001>

<llo_original>
// kernel: tpu_custom_call.1
$region0: #{tpu_custom_call.1}
  #allocation0 [shape = 'u32[]', space=smem, size = 0x4, offset = 0x4, fixed_abs, tag = 'smem constant byte address 0x4 - core index']
  #allocation1 [shape = 'u32[72,128]{1,0:T(1,128)}', space=vmem, size = 0x9000, scoped, tag = 'internal scratch']
  %s0 = inlined_call_operand.vmem [shape: bf16[128,32], index: 0, kind: input, shape index: {}]
  %s1 = inlined_call_operand.vmem [shape: f32[8,1,16], index: 1, kind: input, shape index: {}]
  %s2 = inlined_call_operand.vmem [shape: bf16[32,16], index: 2, kind: input, shape index: {}]
  %s3 = inlined_call_operand.vmem [shape: f32[1,16], index: 3, kind: input, shape index: {}]
  %s4 = inlined_call_operand.vmem [shape: bf16[16,8], index: 4, kind: input, shape index: {}]
  %s5 = inlined_call_operand.vmem [shape: f32[1,8], index: 5, kind: input, shape index: {}]
  %s6 = inlined_call_operand.vmem [shape: bf16[32,32], index: 6, kind: input, shape index: {}]
  %s7 = inlined_call_operand.vmem [shape: f32[1,32], index: 7, kind: input, shape index: {}]
  %s8 = inlined_call_operand.vmem [shape: f32[64,32], index: 8, kind: output, shape index: {0}]
  %s9 = inlined_call_operand.vmem [shape: bf16[64,16], index: 9, kind: output, shape index: {1}]
  %10 = xla_tuple %s8, %s9
  %s11 = sld [smem:[#allocation0]]
  $region73: #{tpu_custom_call.1} parent=0
    _
  %s13 = ssub.s32 1, %s11
  %s14 = scalar_select 0, %s13, %s11
  loop: start=0, step=1, limit=4
  $region2: #{tpu_custom_call.1} parent=0 // loop_pre_header
    _
  $region3: #{tpu_custom_call.1} parent=0 // loop_header
    %s16 = sphi 0, %s20
    %p17 = scmp.ge.s32.totalorder %s16, 4
    %s26 = sphi 0, %s28
    %s29 = sphi 0, %s26
    %s30 = sphi 0, %s29
    %s46 = sphi 0, %s30
    %s52 = sphi 0, %s54
    %s55 = sphi 0, %s52
    %s56 = sphi 0, %s55
    %s72 = sphi 0, %s56
    %s76 = sphi 0, %s76
    %s78 = sphi 0, %s76
    %s79 = sphi 0, %s78
    %s93 = sphi 0, %s79
    %s97 = sphi 0, %s97
    %s99 = sphi 0, %s97
    %s100 = sphi 0, %s99
    %s114 = sphi 0, %s100
    %s118 = sphi 0, %s118
    %s120 = sphi 0, %s118
    %s121 = sphi 0, %s120
    %s135 = sphi 0, %s121
    %s139 = sphi 0, %s139
    %s141 = sphi 0, %s139
    %s142 = sphi 0, %s141
    %s156 = sphi 0, %s142
    %s160 = sphi 0, %s160
    %s162 = sphi 0, %s160
    %s163 = sphi 0, %s162
    %s177 = sphi 0, %s163
    %s181 = sphi 0, %s181
    %s183 = sphi 0, %s181
    %s184 = sphi 0, %s183
    %s198 = sphi 0, %s184
    %s204 = sphi 0, %s206
    %s207 = sphi 0, %s204
    %s208 = sphi 0, %s207
    %s224 = sphi 0, %s208
    %s230 = sphi 0, %s232
    %s233 = sphi 0, %s230
    %s234 = sphi 0, %s233
    %s250 = sphi 0, %s234
  $region4: #{tpu_custom_call.1} parent=0 // loop_header_branch
    %19 = sbr.rel (%p17) target = $region8
  $region5: #{tpu_custom_call.1} parent=0 // loop_body
    %s21 = ssub.s32 %s16, 1
    %s22 = ssub.s32 %s16, 2
    %s23 = sadd.s32 %s16, 1
    %s24 = ssub.s32 %s16, %s23
    %p25 = scmp.eq.s32.totalorder %s24, 0
    %s27 = sadd.s32 %s26, 1
    %s28 = scalar_select %p25, %s26, %s27
    %p31 = pneg %p25
    %p32 = scmp.eq.s32.totalorder %s16, 1
    %p33 = por %p31, %p32
    %p34 = scmp.ne.s32.totalorder %s26, %s29
    %p35 = scmp.eq.s32.totalorder %s16, 0
    %p36 = por %p34, %p35
    %p37 = scmp.ne.s32.totalorder %s26, %s29
    %p38 = scmp.eq.s32.totalorder %s21, 1
    %p39 = por %p37, %p38
    %p40 = scmp.ne.s32.totalorder %s29, %s30
    %p41 = scmp.eq.s32.totalorder %s21, 0
    %p42 = por %p40, %p41
    %p43 = scmp.ne.s32.totalorder %s29, %s30
    %p44 = scmp.eq.s32.totalorder %s22, 1
    %p45 = por %p43, %p44
    %p47 = scmp.ne.s32.totalorder %s30, %s46
    %p48 = scmp.eq.s32.totalorder %s22, 0
    %p49 = por %p47, %p48
    %s50 = ssub.s32 %s16, %s23
    %p51 = scmp.eq.s32.totalorder %s50, 0
    %s53 = sadd.s32 %s52, 1
    %s54 = scalar_select %p51, %s52, %s53
    %p57 = pneg %p51
    %p58 = scmp.eq.s32.totalorder %s16, 1
    %p59 = por %p57, %p58
    %p60 = scmp.ne.s32.totalorder %s52, %s55
    %p61 = scmp.eq.s32.totalorder %s16, 0
    %p62 = por %p60, %p61
    %p63 = scmp.ne.s32.totalorder %s52, %s55
    %p64 = scmp.eq.s32.totalorder %s21, 1
    %p65 = por %p63, %p64
    %p66 = scmp.ne.s32.totalorder %s55, %s56
    %p67 = scmp.eq.s32.totalorder %s21, 0
    %p68 = por %p66, %p67
    %p69 = scmp.ne.s32.totalorder %s55, %s56
    %p70 = scmp.eq.s32.totalorder %s22, 1
    %p71 = por %p69, %p70
    %p73 = scmp.ne.s32.totalorder %s56, %s72
    %p74 = scmp.eq.s32.totalorder %s22, 0
    %p75 = por %p73, %p74
    %s77 = sadd.s32 %s76, 1
    %p80 = scmp.eq.s32.totalorder %s16, 1
    %p81 = scmp.ne.s32.totalorder %s76, %s78
    %p82 = scmp.eq.s32.totalorder %s16, 0
    %p83 = por %p81, %p82
    %p84 = scmp.ne.s32.totalorder %s76, %s78
    %p85 = scmp.eq.s32.totalorder %s21, 1
    %p86 = por %p84, %p85
    %p87 = scmp.ne.s32.totalorder %s78, %s79
    %p88 = scmp.eq.s32.totalorder %s21, 0
    %p89 = por %p87, %p88
    %p90 = scmp.ne.s32.totalorder %s78, %s79
    %p91 = scmp.eq.s32.totalorder %s22, 1
    %p92 = por %p90, %p91
    %p94 = scmp.ne.s32.totalorder %s79, %s93
    %p95 = scmp.eq.s32.totalorder %s22, 0
    %p96 = por %p94, %p95
    %s98 = sadd.s32 %s97, 1
    %p101 = scmp.eq.s32.totalorder %s16, 1
    %p102 = scmp.ne.s32.totalorder %s97, %s99
    %p103 = scmp.eq.s32.totalorder %s16, 0
    %p104 = por %p102, %p103
    %p105 = scmp.ne.s32.totalorder %s97, %s99
    %p106 = scmp.eq.s32.totalorder %s21, 1
    %p107 = por %p105, %p106
    %p108 = scmp.ne.s32.totalorder %s99, %s100
    %p109 = scmp.eq.s32.totalorder %s21, 0
    %p110 = por %p108, %p109
    %p111 = scmp.ne.s32.totalorder %s99, %s100
    %p112 = scmp.eq.s32.totalorder %s22, 1
    %p113 = por %p111, %p112
    %p115 = scmp.ne.s32.totalorder %s100, %s114
    %p116 = scmp.eq.s32.totalorder %s22, 0
    %p117 = por %p115, %p116
    %s119 = sadd.s32 %s118, 1
    %p122 = scmp.eq.s32.totalorder %s16, 1
    %p123 = scmp.ne.s32.totalorder %s118, %s120
    %p124 = scmp.eq.s32.totalorder %s16, 0
    %p125 = por %p123, %p124
    %p126 = scmp.ne.s32.totalorder %s118, %s120
    %p127 = scmp.eq.s32.totalorder %s21, 1
    %p128 = por %p126, %p127
    %p129 = scmp.ne.s32.totalorder %s120, %s121
    %p130 = scmp.eq.s32.totalorder %s21, 0
    %p131 = por %p129, %p130
    %p132 = scmp.ne.s32.totalorder %s120, %s121
    %p133 = scmp.eq.s32.totalorder %s22, 1
    %p134 = por %p132, %p133
    %p136 = scmp.ne.s32.totalorder %s121, %s135
    %p137 = scmp.eq.s32.totalorder %s22, 0
    %p138 = por %p136, %p137
    %s140 = sadd.s32 %s139, 1
    %p143 = scmp.eq.s32.totalorder %s16, 1
    %p144 = scmp.ne.s32.totalorder %s139, %s141
    %p145 = scmp.eq.s32.totalorder %s16, 0
    %p146 = por %p144, %p145
    %p147 = scmp.ne.s32.totalorder %s139, %s141
    %p148 = scmp.eq.s32.totalorder %s21, 1
    %p149 = por %p147, %p148
    %p150 = scmp.ne.s32.totalorder %s141, %s142
    %p151 = scmp.eq.s32.totalorder %s21, 0
    %p152 = por %p150, %p151
    %p153 = scmp.ne.s32.totalorder %s141, %s142
    %p154 = scmp.eq.s32.totalorder %s22, 1
    %p155 = por %p153, %p154
    %p157 = scmp.ne.s32.totalorder %s142, %s156
    %p158 = scmp.eq.s32.totalorder %s22, 0
    %p159 = por %p157, %p158
    %s161 = sadd.s32 %s160, 1
    %p164 = scmp.eq.s32.totalorder %s16, 1
    %p165 = scmp.ne.s32.totalorder %s160, %s162
    %p166 = scmp.eq.s32.totalorder %s16, 0
    %p167 = por %p165, %p166
    %p168 = scmp.ne.s32.totalorder %s160, %s162
    %p169 = scmp.eq.s32.totalorder %s21, 1
    %p170 = por %p168, %p169
    %p171 = scmp.ne.s32.totalorder %s162, %s163
    %p172 = scmp.eq.s32.totalorder %s21, 0
    %p173 = por %p171, %p172
    %p174 = scmp.ne.s32.totalorder %s162, %s163
    %p175 = scmp.eq.s32.totalorder %s22, 1
    %p176 = por %p174, %p175
    %p178 = scmp.ne.s32.totalorder %s163, %s177
    %p179 = scmp.eq.s32.totalorder %s22, 0
    %p180 = por %p178, %p179
    %s182 = sadd.s32 %s181, 1
    %p185 = scmp.eq.s32.totalorder %s16, 1
    %p186 = scmp.ne.s32.totalorder %s181, %s183
    %p187 = scmp.eq.s32.totalorder %s16, 0
    %p188 = por %p186, %p187
    %p189 = scmp.ne.s32.totalorder %s181, %s183
    %p190 = scmp.eq.s32.totalorder %s21, 1
    %p191 = por %p189, %p190
    %p192 = scmp.ne.s32.totalorder %s183, %s184
    %p193 = scmp.eq.s32.totalorder %s21, 0
    %p194 = por %p192, %p193
    %p195 = scmp.ne.s32.totalorder %s183, %s184
    %p196 = scmp.eq.s32.totalorder %s22, 1
    %p197 = por %p195, %p196
    %p199 = scmp.ne.s32.totalorder %s184, %s198
    %p200 = scmp.eq.s32.totalorder %s22, 0
    %p201 = por %p199, %p200
    %s202 = ssub.s32 %s16, %s23
    %p203 = scmp.eq.s32.totalorder %s202, 0
    %s205 = sadd.s32 %s204, 1
    %s206 = scalar_select %p203, %s204, %s205
    %p209 = pneg %p203
    %p210 = scmp.eq.s32.totalorder %s16, 1
    %p211 = por %p209, %p210
    %p212 = scmp.ne.s32.totalorder %s204, %s207
    %p213 = scmp.eq.s32.totalorder %s16, 0
    %p214 = por %p212, %p213
    %p215 = scmp.ne.s32.totalorder %s204, %s207
    %p216 = scmp.eq.s32.totalorder %s21, 1
    %p217 = por %p215, %p216
    %p218 = scmp.ne.s32.totalorder %s207, %s208
    %p219 = scmp.eq.s32.totalorder %s21, 0
    %p220 = por %p218, %p219
    %p221 = scmp.ne.s32.totalorder %s207, %s208
    %p222 = scmp.eq.s32.totalorder %s22, 1
    %p223 = por %p221, %p222
    %p225 = scmp.ne.s32.totalorder %s208, %s224
    %p226 = scmp.eq.s32.totalorder %s22, 0
    %p227 = por %p225, %p226
    %s228 = ssub.s32 %s16, %s23
    %p229 = scmp.eq.s32.totalorder %s228, 0
    %s231 = sadd.s32 %s230, 1
    %s232 = scalar_select %p229, %s230, %s231
    %p235 = pneg %p229
    %p236 = scmp.eq.s32.totalorder %s16, 1
    %p237 = por %p235, %p236
    %p238 = scmp.ne.s32.totalorder %s230, %s233
    %p239 = scmp.eq.s32.totalorder %s16, 0
    %p240 = por %p238, %p239
    %p241 = scmp.ne.s32.totalorder %s230, %s233
    %p242 = scmp.eq.s32.totalorder %s21, 1
    %p243 = por %p241, %p242
    %p244 = scmp.ne.s32.totalorder %s233, %s234
    %p245 = scmp.eq.s32.totalorder %s21, 0
    %p246 = por %p244, %p245
    %p247 = scmp.ne.s32.totalorder %s233, %s234
    %p248 = scmp.eq.s32.totalorder %s22, 1
    %p249 = por %p247, %p248
    %p251 = scmp.ne.s32.totalorder %s234, %s250
    %p252 = scmp.eq.s32.totalorder %s22, 0
    %p253 = por %p251, %p252
    %p254 = scmp.le.s32.totalorder 1, %s16
    %p255 = scmp.lt.s32.totalorder %s16, 3
    %p256 = pnand %p254, %p255
    %p257 = pneg %p256
    // Predicated region
    $region9: #{tpu_custom_call.1} parent=5 // pred_check
      _
    $region10: #{tpu_custom_call.1} parent=5 // pred_check_branch
      %259 = sbr.rel (%p256) target = $region12
    $region11: #{tpu_custom_call.1} parent=5 // pred_region
      %s260 = ssub.s32 %s16, 1
      // Predicated region
      $region13: #{tpu_custom_call.1} parent=11 // pred_check
        %p261 = pneg %p89
      $region14: #{tpu_custom_call.1} parent=11 // pred_check_branch
        %263 = sbr.rel (%p261) target = $region16
      $region15: #{tpu_custom_call.1} parent=11 // pred_region
        _
      $region16: #{tpu_custom_call.1} parent=11 // pred_fallthru
        _
      // Predicated region
      $region17: #{tpu_custom_call.1} parent=11 // pred_check
        %p264 = pneg %p110
      $region18: #{tpu_custom_call.1} parent=11 // pred_check_branch
        %266 = sbr.rel (%p264) target = $region20
      $region19: #{tpu_custom_call.1} parent=11 // pred_region
        _
      $region20: #{tpu_custom_call.1} parent=11 // pred_fallthru
        _
      // Predicated region
      $region21: #{tpu_custom_call.1} parent=11 // pred_check
        %p267 = pneg %p131
      $region22: #{tpu_custom_call.1} parent=11 // pred_check_branch
        %269 = sbr.rel (%p267) target = $region24
      $region23: #{tpu_custom_call.1} parent=11 // pred_region
        _
      $region24: #{tpu_custom_call.1} parent=11 // pred_fallthru
        _
      // Predicated region
      $region25: #{tpu_custom_call.1} parent=11 // pred_check
        %p270 = pneg %p152
      $region26: #{tpu_custom_call.1} parent=11 // pred_check_branch
        %272 = sbr.rel (%p270) target = $region28
      $region27: #{tpu_custom_call.1} parent=11 // pred_region
        _
      $region28: #{tpu_custom_call.1} parent=11 // pred_fallthru
        _
      // Predicated region
      $region29: #{tpu_custom_call.1} parent=11 // pred_check
        %p273 = pneg %p173
      $region30: #{tpu_custom_call.1} parent=11 // pred_check_branch
        %275 = sbr.rel (%p273) target = $region32
      $region31: #{tpu_custom_call.1} parent=11 // pred_region
        _
      $region32: #{tpu_custom_call.1} parent=11 // pred_fallthru
        _
      // Predicated region
      $region33: #{tpu_custom_call.1} parent=11 // pred_check
        %p276 = pneg %p194
      $region34: #{tpu_custom_call.1} parent=11 // pred_check_branch
        %278 = sbr.rel (%p276) target = $region36
      $region35: #{tpu_custom_call.1} parent=11 // pred_region
        _
      $region36: #{tpu_custom_call.1} parent=11 // pred_fallthru
        _
    $region12: #{tpu_custom_call.1} parent=5 // pred_fallthru
      _
    %p279 = scmp.lt.s32.totalorder %s16, 2
    // Predicated region
    $region37: #{tpu_custom_call.1} parent=5 // pred_check
      %p280 = pneg %p279
    $region38: #{tpu_custom_call.1} parent=5 // pred_check_branch
      %282 = sbr.rel (%p280) target = $region40
    $region39: #{tpu_custom_call.1} parent=5 // pred_region
      // Predicated region
      $region41: #{tpu_custom_call.1} parent=39 // pred_check
        %p283 = pneg %p36
      $region42: #{tpu_custom_call.1} parent=39 // pred_check_branch
        %285 = sbr.rel (%p283) target = $region44
      $region43: #{tpu_custom_call.1} parent=39 // pred_region
        %s286 = smul.u32 8, %s16
        %p287 = scmp.lt.s32.totalorder %s286, 15
        %s288 = scalar_select %p287, %s286, 15
        %s289 = smul.addr %s288, 4
        %s290 = scalar_lea.vmem %s0, %s289
        %s291 = smul.u32 8, %s16
      $region44: #{tpu_custom_call.1} parent=39 // pred_fallthru
        _
      // Predicated region
      $region45: #{tpu_custom_call.1} parent=39 // pred_check
        %p292 = pneg %p62
      $region46: #{tpu_custom_call.1} parent=39 // pred_check_branch
        %294 = sbr.rel (%p292) target = $region48
      $region47: #{tpu_custom_call.1} parent=39 // pred_region
        %s295 = smul.u32 4, %s16
        %p296 = scmp.lt.s32.totalorder %s295, 7
        %s297 = scalar_select %p296, %s295, 7
        %s298 = scalar_lea.vmem %s1, %s297
        %s299 = smul.u32 4, %s16
      $region48: #{tpu_custom_call.1} parent=39 // pred_fallthru
        _
    $region40: #{tpu_custom_call.1} parent=5 // pred_fallthru
      _
    %p300 = scmp.le.s32.totalorder 1, %s16
    %p301 = scmp.lt.s32.totalorder %s16, 3
    %p302 = pnand %p300, %p301
    %p303 = pneg %p302
    // Predicated region
    $region49: #{tpu_custom_call.1} parent=5 // pred_check
      _
    $region50: #{tpu_custom_call.1} parent=5 // pred_check_branch
      %305 = sbr.rel (%p302) target = $region52
    $region51: #{tpu_custom_call.1} parent=5 // pred_region
      %s306 = ssub.s32 %s16, 1
      %s307 = smul.u32 8, %s21
      %p308 = scmp.lt.s32.totalorder %s307, 15
      %s309 = scalar_select %p308, %s307, 15
      %s310 = smul.addr %s309, 4
      %s311 = scalar_lea.vmem %s0, %s310
      %p312 = pneg %p42
      %p313 = pneg %p39
      %s314 = smul.u32 4, %s21
      %p315 = scmp.lt.s32.totalorder %s314, 7
      %s316 = scalar_select %p315, %s314, 7
      %s317 = scalar_lea.vmem %s1, %s316
      %p318 = pneg %p68
      %p319 = pneg %p65
      %p320 = pneg %p89
      %p321 = pneg %p86
      %p322 = pneg %p110
      %p323 = pneg %p107
      %p324 = pneg %p131
      %p325 = pneg %p128
      %p326 = pneg %p152
      %p327 = pneg %p149
      %p328 = pneg %p173
      %p329 = pneg %p170
      %p330 = pneg %p194
      %p331 = pneg %p191
      %p332 = pneg %p220
      %p333 = pneg %p217
      %s334 = smul.u32 4, %s21
      %p335 = scmp.lt.s32.totalorder %s334, 7
      %s336 = scalar_select %p335, %s334, 7
      %s337 = smul.addr %s336, 8
      %s338 = scalar_lea.vmem %s8, %s337
      %p339 = pneg %p246
      %p340 = pneg %p243
      %s341 = smul.u32 4, %s21
      %p342 = scmp.lt.s32.totalorder %s341, 7
      %s343 = scalar_select %p342, %s341, 7
      %s344 = smul.addr %s343, 4
      %s345 = scalar_lea.vmem %s9, %s344
      %s346 = smul.u32 8, %s21
      %p347 = scmp.lt.s32.totalorder %s346, 15
      %s348 = scalar_select %p347, %s346, 15
      %s349 = smul.addr %s348, 4
      %s350 = scalar_lea.vmem %s0, %s349
      %s351 = smul.u32 8, %s21
      %s352 = smul.u32 4, %s21
      %p353 = scmp.lt.s32.totalorder %s352, 7
      %s354 = scalar_select %p353, %s352, 7
      %s355 = scalar_lea.vmem %s1, %s354
      %s356 = smul.u32 4, %s21
      %s357 = smul.u32 4, %s21
      %p358 = scmp.lt.s32.totalorder %s357, 7
      %s359 = scalar_select %p358, %s357, 7
      %s360 = smul.addr %s359, 8
      %s361 = scalar_lea.vmem %s8, %s360
      %s362 = smul.u32 4, %s21
      %s363 = smul.u32 4, %s21
      %p364 = scmp.lt.s32.totalorder %s363, 7
      %s365 = scalar_select %p364, %s363, 7
      %s366 = smul.addr %s365, 4
      %s367 = scalar_lea.vmem %s9, %s366
      %s368 = smul.u32 4, %s21
      %v370 = vld [vmem:[%s350] sm:$0xf]
      %v371 = vld [vmem:[%s350 + $0x4] sm:$0xf]
      %v372 = vld [vmem:[%s350 + $0x8] sm:$0xf]
      %v373 = vld [vmem:[%s350 + $0xc] sm:$0xf]
      %v374 = vld [vmem:[%s350 + $0x10] sm:$0xf]
      %v375 = vld [vmem:[%s350 + $0x14] sm:$0xf]
      %v376 = vld [vmem:[%s350 + $0x18] sm:$0xf]
      %v377 = vld [vmem:[%s350 + $0x1c] sm:$0xf]
      %v378 = vld [vmem:[%s2] sm:$0xf]
      %v379 = vld [vmem:[%s2 + $0x4] sm:$0xf]
      %v380 = vld [vmem:[%s2 + $0x8] sm:$0xf]
      %v381 = vld [vmem:[%s2 + $0xc] sm:$0xf]
      %v382 = vld [vmem:[%s3] sm:$0x1]
      %v384 = vperm.slane %v382, 0
      %v394 = vunpack.c.l.b16 %v370
      %v395 = vunpack.c.l.b16 %v371
      %v396 = vunpack.c.l.b16 %v372
      %v397 = vunpack.c.l.b16 %v373
      %v398 = vunpack.c.l.b16 %v374
      %v399 = vunpack.c.l.b16 %v375
      %v400 = vunpack.c.l.b16 %v376
      %v401 = vunpack.c.l.b16 %v377
      %v402 = vpack.c.b16 %v395, %v394
      %v403 = vpack.c.b16 %v397, %v396
      %v404 = vpack.c.b16 %v399, %v398
      %v405 = vpack.c.b16 %v401, %v400
      %v410 = vunpack.c.l.b16 %v378
      %v411 = vunpack.c.l.b16 %v379
      %v412 = vunpack.c.l.b16 %v380
      %v413 = vunpack.c.l.b16 %v381
      %v414 = vpack.c.b16 %v411, %v410
      %v415 = vpack.c.b16 %v413, %v412
      %vm418 = vcmask 261120
      %v420 = vsel %vm418, %v402, 0
      %v423 = vsel %vm418, %v403, 0
      %v426 = vsel %vm418, %v404, 0
      %v429 = vsel %vm418, %v405, 0
      %431 = vmatpush.bf16.msra.mxu0 0
      %432 = vmatpush.bf16.msra.mxu0 0
      %433 = vmatpush.bf16.msra.mxu0 0
      %434 = vmatpush.bf16.msra.mxu0 0
      %435 = vmatpush.bf16.msra.mxu0 0
      %436 = vmatpush.bf16.msra.mxu0 0
      %437 = vmatpush.bf16.msra.mxu0 %v415
      %438 = vmatpush.bf16.msra.mxu0 %v414
      %439 = vmatmul.bf16.gmra.mxu0 %v420
      %v440 = vpop.f32.mrf.mxu0
      %v441 = vadd.f32 %v384, %v440
      %v442 = vpop.f32.mrf.mxu0
      %v443 = vadd.f32 %v384, %v442
      %444 = vmatmul.bf16.gmra.mxu0 %v423
      %v445 = vpop.f32.mrf.mxu0
      %v446 = vadd.f32 %v384, %v445
      %v447 = vpop.f32.mrf.mxu0
      %v448 = vadd.f32 %v384, %v447
      %449 = vmatmul.bf16.gmra.mxu0 %v426
      %v450 = vpop.f32.mrf.mxu0
      %v451 = vadd.f32 %v384, %v450
      %v452 = vpop.f32.mrf.mxu0
      %v453 = vadd.f32 %v384, %v452
      %454 = vmatmul.bf16.gmra.mxu0 %v429
      %v455 = vpop.f32.mrf.mxu0
      %v456 = vadd.f32 %v384, %v455
      %v457 = vpop.f32.mrf.mxu0
      %v458 = vadd.f32 %v384, %v457
      %459 = vdwg.mxu0
      %v460 = vtanh.pop %v441
      %v461 = vtanh.pop %v443
      %v462 = vtanh.pop %v446
      %v463 = vtanh.pop %v448
      %v464 = vtanh.pop %v451
      %v465 = vtanh.pop %v453
      %v466 = vtanh.pop %v456
      %v467 = vtanh.pop %v458
      %v468 = vpack.c.bf16 %v461, %v460
      %v469 = vpack.c.bf16 %v463, %v462
      %v470 = vpack.c.bf16 %v465, %v464
      %v471 = vpack.c.bf16 %v467, %v466
      %v472 = vld [vmem:[%s4] sm:$0xf]
      %v473 = vld [vmem:[%s4 + $0x4] sm:$0xf]
      %v474 = vld [vmem:[%s5] sm:$0x1]
      %v476 = vperm.slane %v474, 0
      %v480 = vunpack.c.l.b16 %v472
      %v481 = vunpack.c.l.b16 %v473
      %v482 = vpack.c.b16 %v481, %v480
      %vm484 = vcmask 130048
      %v486 = vsel %vm484, %v468, 0
      %v489 = vsel %vm484, %v469, 0
      %v492 = vsel %vm484, %v470, 0
      %v495 = vsel %vm484, %v471, 0
      %497 = vmatpush.bf16.msra.mxu0 0
      %498 = vmatpush.bf16.msra.mxu0 0
      %499 = vmatpush.bf16.msra.mxu0 0
      %500 = vmatpush.bf16.msra.mxu0 0
      %501 = vmatpush.bf16.msra.mxu0 0
      %502 = vmatpush.bf16.msra.mxu0 0
      %503 = vmatpush.bf16.msra.mxu0 0
      %504 = vmatpush.bf16.msra.mxu0 %v482
      %505 = vmatmul.bf16.gmra.mxu0 %v486
      %v506 = vpop.f32.mrf.mxu0
      %v507 = vadd.f32 %v476, %v506
      %v508 = vpop.f32.mrf.mxu0
      %v509 = vadd.f32 %v476, %v508
      %510 = vmatmul.bf16.gmra.mxu0 %v489
      %v511 = vpop.f32.mrf.mxu0
      %v512 = vadd.f32 %v476, %v511
      %v513 = vpop.f32.mrf.mxu0
      %v514 = vadd.f32 %v476, %v513
      %515 = vmatmul.bf16.gmra.mxu0 %v492
      %v516 = vpop.f32.mrf.mxu0
      %v517 = vadd.f32 %v476, %v516
      %v518 = vpop.f32.mrf.mxu0
      %v519 = vadd.f32 %v476, %v518
      %520 = vmatmul.bf16.gmra.mxu0 %v495
      %v521 = vpop.f32.mrf.mxu0
      %v522 = vadd.f32 %v476, %v521
      %v523 = vpop.f32.mrf.mxu0
      %v524 = vadd.f32 %v476, %v523
      %525 = vdwg.mxu0
      %526 = vxpose.xlu0.b32.start [1/16] %v507, 128
      %527 = vxpose.xlu0.b32.cont [2/16] %v509, 128
      %528 = vxpose.xlu0.b32.cont [3/16] 0.0, 128
      %529 = vxpose.xlu0.b32.cont [4/16] 0.0, 128
      %530 = vxpose.xlu0.b32.cont [5/16] 0.0, 128
      %531 = vxpose.xlu0.b32.cont [6/16] 0.0, 128
      %532 = vxpose.xlu0.b32.cont [7/16] 0.0, 128
      %533 = vxpose.xlu0.b32.cont [8/16] 0.0, 128
      %534 = vxpose.xlu0.b32.cont [9/16] 0.0, 128
      %535 = vxpose.xlu0.b32.cont [10/16] 0.0, 128
      %536 = vxpose.xlu0.b32.cont [11/16] 0.0, 128
      %537 = vxpose.xlu0.b32.cont [12/16] 0.0, 128
      %538 = vxpose.xlu0.b32.cont [13/16] 0.0, 128
      %539 = vxpose.xlu0.b32.cont [14/16] 0.0, 128
      %540 = vxpose.xlu0.b32.cont [15/16] 0.0, 128
      %541 = vxpose.xlu0.b32.end [16/16] 0.0, 128
      %v542 = vpop.trf.xlu0
      %v543 = vpop.trf.xlu0
      %v544 = vpop.trf.xlu0
      %v545 = vpop.trf.xlu0
      %v546 = vpop.trf.xlu0
      %v547 = vpop.trf.xlu0
      %v548 = vpop.trf.xlu0
      %v549 = vpop.trf.xlu0
      %v550 = vpop.trf.xlu0
      %v551 = vpop.trf.xlu0
      %v552 = vpop.trf.xlu0
      %v553 = vpop.trf.xlu0
      %v554 = vpop.trf.xlu0
      %v555 = vpop.trf.xlu0
      %v556 = vpop.trf.xlu0
      %v557 = vpop.trf.xlu0
      %558 = vxpose.xlu0.b32.start [1/16] %v512, 128
      %559 = vxpose.xlu0.b32.cont [2/16] %v514, 128
      %560 = vxpose.xlu0.b32.cont [3/16] 0.0, 128
      %561 = vxpose.xlu0.b32.cont [4/16] 0.0, 128
      %562 = vxpose.xlu0.b32.cont [5/16] 0.0, 128
      %563 = vxpose.xlu0.b32.cont [6/16] 0.0, 128
      %564 = vxpose.xlu0.b32.cont [7/16] 0.0, 128
      %565 = vxpose.xlu0.b32.cont [8/16] 0.0, 128
      %566 = vxpose.xlu0.b32.cont [9/16] 0.0, 128
      %567 = vxpose.xlu0.b32.cont [10/16] 0.0, 128
      %568 = vxpose.xlu0.b32.cont [11/16] 0.0, 128
      %569 = vxpose.xlu0.b32.cont [12/16] 0.0, 128
      %570 = vxpose.xlu0.b32.cont [13/16] 0.0, 128
      %571 = vxpose.xlu0.b32.cont [14/16] 0.0, 128
      %572 = vxpose.xlu0.b32.cont [15/16] 0.0, 128
      %573 = vxpose.xlu0.b32.end [16/16] 0.0, 128
      %v574 = vpop.trf.xlu0
      %v575 = vpop.trf.xlu0
      %v576 = vpop.trf.xlu0
      %v577 = vpop.trf.xlu0
      %v578 = vpop.trf.xlu0
      %v579 = vpop.trf.xlu0
      %v580 = vpop.trf.xlu0
      %v581 = vpop.trf.xlu0
      %v582 = vpop.trf.xlu0
      %v583 = vpop.trf.xlu0
      %v584 = vpop.trf.xlu0
      %v585 = vpop.trf.xlu0
      %v586 = vpop.trf.xlu0
      %v587 = vpop.trf.xlu0
      %v588 = vpop.trf.xlu0
      %v589 = vpop.trf.xlu0
      %590 = vxpose.xlu0.b32.start [1/16] %v517, 128
      %591 = vxpose.xlu0.b32.cont [2/16] %v519, 128
      %592 = vxpose.xlu0.b32.cont [3/16] 0.0, 128
      %593 = vxpose.xlu0.b32.cont [4/16] 0.0, 128
      %594 = vxpose.xlu0.b32.cont [5/16] 0.0, 128
      %595 = vxpose.xlu0.b32.cont [6/16] 0.0, 128
      %596 = vxpose.xlu0.b32.cont [7/16] 0.0, 128
      %597 = vxpose.xlu0.b32.cont [8/16] 0.0, 128
      %598 = vxpose.xlu0.b32.cont [9/16] 0.0, 128
      %599 = vxpose.xlu0.b32.cont [10/16] 0.0, 128
      %600 = vxpose.xlu0.b32.cont [11/16] 0.0, 128
      %601 = vxpose.xlu0.b32.cont [12/16] 0.0, 128
      %602 = vxpose.xlu0.b32.cont [13/16] 0.0, 128
      %603 = vxpose.xlu0.b32.cont [14/16] 0.0, 128
      %604 = vxpose.xlu0.b32.cont [15/16] 0.0, 128
      %605 = vxpose.xlu0.b32.end [16/16] 0.0, 128
      %v606 = vpop.trf.xlu0
      %v607 = vpop.trf.xlu0
      %v608 = vpop.trf.xlu0
      %v609 = vpop.trf.xlu0
      %v610 = vpop.trf.xlu0
      %v611 = vpop.trf.xlu0
      %v612 = vpop.trf.xlu0
      %v613 = vpop.trf.xlu0
      %v614 = vpop.trf.xlu0
      %v615 = vpop.trf.xlu0
      %v616 = vpop.trf.xlu0
      %v617 = vpop.trf.xlu0
      %v618 = vpop.trf.xlu0
      %v619 = vpop.trf.xlu0
      %v620 = vpop.trf.xlu0
      %v621 = vpop.trf.xlu0
      %622 = vxpose.xlu0.b32.start [1/16] %v522, 128
      %623 = vxpose.xlu0.b32.cont [2/16] %v524, 128
      %624 = vxpose.xlu0.b32.cont [3/16] 0.0, 128
      %625 = vxpose.xlu0.b32.cont [4/16] 0.0, 128
      %626 = vxpose.xlu0.b32.cont [5/16] 0.0, 128
      %627 = vxpose.xlu0.b32.cont [6/16] 0.0, 128
      %628 = vxpose.xlu0.b32.cont [7/16] 0.0, 128
      %629 = vxpose.xlu0.b32.cont [8/16] 0.0, 128
      %630 = vxpose.xlu0.b32.cont [9/16] 0.0, 128
      %631 = vxpose.xlu0.b32.cont [10/16] 0.0, 128
      %632 = vxpose.xlu0.b32.cont [11/16] 0.0, 128
      %633 = vxpose.xlu0.b32.cont [12/16] 0.0, 128
      %634 = vxpose.xlu0.b32.cont [13/16] 0.0, 128
      %635 = vxpose.xlu0.b32.cont [14/16] 0.0, 128
      %636 = vxpose.xlu0.b32.cont [15/16] 0.0, 128
      %637 = vxpose.xlu0.b32.end [16/16] 0.0, 128
      %v638 = vpop.trf.xlu0
      %v639 = vpop.trf.xlu0
      %v640 = vpop.trf.xlu0
      %v641 = vpop.trf.xlu0
      %v642 = vpop.trf.xlu0
      %v643 = vpop.trf.xlu0
      %v644 = vpop.trf.xlu0
      %v645 = vpop.trf.xlu0
      %v646 = vpop.trf.xlu0
      %v647 = vpop.trf.xlu0
      %v648 = vpop.trf.xlu0
      %v649 = vpop.trf.xlu0
      %v650 = vpop.trf.xlu0
      %v651 = vpop.trf.xlu0
      %v652 = vpop.trf.xlu0
      %v653 = vpop.trf.xlu0
      %v654 = vld [vmem:[%s355] sm:$0x1]
      %v655 = vld [vmem:[%s355 + $0x1] sm:$0x1]
      %v656 = vld [vmem:[%s355 + $0x2] sm:$0x1]
      %v657 = vld [vmem:[%s355 + $0x3] sm:$0x1]
      %vm658 = vcmp.eq.f32.partialorder %v654, 0.0
      %vm659 = vcmp.eq.f32.partialorder %v655, 0.0
      %vm660 = vcmp.eq.f32.partialorder %v656, 0.0
      %vm661 = vcmp.eq.f32.partialorder %v657, 0.0
      %v662 = vsel %vm658, 1, 0
      %v663 = vsel %vm659, 1, 0
      %v664 = vsel %vm660, 1, 0
      %v665 = vsel %vm661, 1, 0
      %v666 = vperm.slane %v662, 0
      %v667 = vperm.slane %v663, 0
      %v668 = vperm.slane %v664, 0
      %v669 = vperm.slane %v665, 0
      %vm670 = vcmp.eq.s32.totalorder %v666, 1
      %vm671 = vcmp.eq.s32.totalorder %v667, 1
      %vm672 = vcmp.eq.s32.totalorder %v668, 1
      %vm673 = vcmp.eq.s32.totalorder %v669, 1
      %v674 = vsel %vm670, -10000.0, %v542
      %v675 = vsel %vm671, -10000.0, %v574
      %v676 = vsel %vm672, -10000.0, %v606
      %v677 = vsel %vm673, -10000.0, %v638
      %v678 = vsel %vm484, %v674, -inf
      %679 = vmax.xlane.f32.xlu0 %v678
      %v680 = vpop.xlane.xlu0 %679
      %v681 = vsel %vm484, %v675, -inf
      %682 = vmax.xlane.f32.xlu0 %v681
      %v683 = vpop.xlane.xlu0 %682
      %v684 = vsel %vm484, %v676, -inf
      %685 = vmax.xlane.f32.xlu0 %v684
      %v686 = vpop.xlane.xlu0 %685
      %v687 = vsel %vm484, %v677, -inf
      %688 = vmax.xlane.f32.xlu0 %v687
      %v689 = vpop.xlane.xlu0 %688
      %v690 = vsub.f32 %v674, %v680
      %v691 = vsub.f32 %v675, %v683
      %v692 = vsub.f32 %v676, %v686
      %v693 = vsub.f32 %v677, %v689
      %v694 = vmul.f32 %v690, 1.442695
      %v695 = vpow.pop %v694
      %v696 = vmul.f32 %v691, 1.442695
      %v697 = vpow.pop %v696
      %v698 = vmul.f32 %v692, 1.442695
      %v699 = vpow.pop %v698
      %v700 = vmul.f32 %v693, 1.442695
      %v701 = vpow.pop %v700
      %v702 = vsel %vm484, %v695, 0.0
      %703 = vadd.xlane.f32.xlu0 %v702
      %v704 = vpop.xlane.xlu0 %703
      %v705 = vsel %vm484, %v697, 0.0
      %706 = vadd.xlane.f32.xlu0 %v705
      %v707 = vpop.xlane.xlu0 %706
      %v708 = vsel %vm484, %v699, 0.0
      %709 = vadd.xlane.f32.xlu0 %v708
      %v710 = vpop.xlane.xlu0 %709
      %v711 = vsel %vm484, %v701, 0.0
      %712 = vadd.xlane.f32.xlu0 %v711
      %v713 = vpop.xlane.xlu0 %712
      %v714 = vrcp.pop %v704
      %v715 = vrcp.pop %v707
      %v716 = vrcp.pop %v710
      %v717 = vrcp.pop %v713
      %v718 = vmul.f32 %v695, %v714
      %v719 = vmul.f32 %v697, %v715
      %v720 = vmul.f32 %v699, %v716
      %v721 = vmul.f32 %v701, %v717
      %v722 = vsel %vm670, 0.0, %v718
      %v723 = vsel %vm671, 0.0, %v719
      %v724 = vsel %vm672, 0.0, %v720
      %v725 = vsel %vm673, 0.0, %v721
      %v726 = vpack.c.bf16 %v722, %v722
      %v727 = vpack.c.bf16 %v723, %v723
      %v728 = vpack.c.bf16 %v724, %v724
      %v729 = vpack.c.bf16 %v725, %v725
      %v732 = vsel %vm484, %v726, 0
      %734 = vmatpush.bf16.msra.mxu0 0
      %735 = vmatpush.bf16.msra.mxu0 0
      %736 = vmatpush.bf16.msra.mxu0 0
      %737 = vmatpush.bf16.msra.mxu0 0
      %738 = vmatpush.bf16.msra.mxu0 0
      %739 = vmatpush.bf16.msra.mxu0 0
      %740 = vmatpush.bf16.msra.mxu0 0
      %741 = vmatpush.bf16.msra.mxu0 %v402
      %742 = vmatmul.bf16.gmra.mxu0 %v732
      %v743 = vpop.f32.mrf.mxu0
      %v744 = vadd.f32 0.0, %v743
      %v745 = vpop.f32.mrf.mxu0
      %746 = vdwg.mxu0
      %v749 = vsel %vm484, %v727, 0
      %751 = vmatpush.bf16.msra.mxu0 0
      %752 = vmatpush.bf16.msra.mxu0 0
      %753 = vmatpush.bf16.msra.mxu0 0
      %754 = vmatpush.bf16.msra.mxu0 0
      %755 = vmatpush.bf16.msra.mxu0 0
      %756 = vmatpush.bf16.msra.mxu0 0
      %757 = vmatpush.bf16.msra.mxu0 0
      %758 = vmatpush.bf16.msra.mxu0 %v403
      %759 = vmatmul.bf16.gmra.mxu0 %v749
      %v760 = vpop.f32.mrf.mxu0
      %v761 = vadd.f32 0.0, %v760
      %v762 = vpop.f32.mrf.mxu0
      %763 = vdwg.mxu0
      %v766 = vsel %vm484, %v728, 0
      %768 = vmatpush.bf16.msra.mxu0 0
      %769 = vmatpush.bf16.msra.mxu0 0
      %770 = vmatpush.bf16.msra.mxu0 0
      %771 = vmatpush.bf16.msra.mxu0 0
      %772 = vmatpush.bf16.msra.mxu0 0
      %773 = vmatpush.bf16.msra.mxu0 0
      %774 = vmatpush.bf16.msra.mxu0 0
      %775 = vmatpush.bf16.msra.mxu0 %v404
      %776 = vmatmul.bf16.gmra.mxu0 %v766
      %v777 = vpop.f32.mrf.mxu0
      %v778 = vadd.f32 0.0, %v777
      %v779 = vpop.f32.mrf.mxu0
      %780 = vdwg.mxu0
      %v783 = vsel %vm484, %v729, 0
      %785 = vmatpush.bf16.msra.mxu0 0
      %786 = vmatpush.bf16.msra.mxu0 0
      %787 = vmatpush.bf16.msra.mxu0 0
      %788 = vmatpush.bf16.msra.mxu0 0
      %789 = vmatpush.bf16.msra.mxu0 0
      %790 = vmatpush.bf16.msra.mxu0 0
      %791 = vmatpush.bf16.msra.mxu0 0
      %792 = vmatpush.bf16.msra.mxu0 %v405
      %793 = vmatmul.bf16.gmra.mxu0 %v783
      %v794 = vpop.f32.mrf.mxu0
      %v795 = vadd.f32 0.0, %v794
      %v796 = vpop.f32.mrf.mxu0
      %797 = vdwg.mxu0
      %v798 = vpack.c.bf16 %v761, %v744
      %v799 = vpack.c.bf16 %v795, %v778
      %v800 = vld [vmem:[%s6] sm:$0xf]
      %v801 = vld [vmem:[%s6 + $0x4] sm:$0xf]
      %v802 = vld [vmem:[%s6 + $0x8] sm:$0xf]
      %v803 = vld [vmem:[%s6 + $0xc] sm:$0xf]
      %v804 = vld [vmem:[%s7] sm:$0x1]
      %v806 = vperm.slane %v804, 0
      %v812 = vunpack.c.l.b16 %v800
      %v813 = vunpack.c.l.b16 %v801
      %v814 = vunpack.c.l.b16 %v802
      %v815 = vunpack.c.l.b16 %v803
      %v816 = vpack.c.b16 %v813, %v812
      %v817 = vpack.c.b16 %v815, %v814
      %v821 = vsel %vm418, %v798, 0
      %v824 = vsel %vm418, %v799, 0
      %826 = vmatpush.bf16.msra.mxu0 0
      %827 = vmatpush.bf16.msra.mxu0 0
      %828 = vmatpush.bf16.msra.mxu0 0
      %829 = vmatpush.bf16.msra.mxu0 0
      %830 = vmatpush.bf16.msra.mxu0 0
      %831 = vmatpush.bf16.msra.mxu0 0
      %832 = vmatpush.bf16.msra.mxu0 %v817
      %833 = vmatpush.bf16.msra.mxu0 %v816
      %834 = vmatmul.bf16.gmra.mxu0 %v821
      %v835 = vpop.f32.mrf.mxu0
      %v836 = vadd.f32 %v806, %v835
      %v837 = vpop.f32.mrf.mxu0
      %v838 = vadd.f32 %v806, %v837
      %839 = vmatmul.bf16.gmra.mxu0 %v824
      %v840 = vpop.f32.mrf.mxu0
      %v841 = vadd.f32 %v806, %v840
      %v842 = vpop.f32.mrf.mxu0
      %v843 = vadd.f32 %v806, %v842
      %844 = vdwg.mxu0
      %845 = vst.msk [vmem:[%s361] sm:$0xff] %vm418, %v836
      %846 = vst.msk [vmem:[%s361 + $0x8] sm:$0xff] %vm418, %v838
      %847 = vst.msk [vmem:[%s361 + $0x10] sm:$0xff] %vm418, %v841
      %848 = vst.msk [vmem:[%s361 + $0x18] sm:$0xff] %vm418, %v843
      %vm849 = vcmask 125952
      %850 = vst.msk [vmem:[%s367] sm:$0xf] %vm849, %v726
      %851 = vst.msk [vmem:[%s367 + $0x4] sm:$0xf] %vm849, %v727
      %852 = vst.msk [vmem:[%s367 + $0x8] sm:$0xf] %vm849, %v728
      %853 = vst.msk [vmem:[%s367 + $0xc] sm:$0xf] %vm849, %v729
      %s854 = smul.u32 4, %s21
      %p855 = scmp.lt.s32.totalorder %s854, 7
      %s856 = scalar_select %p855, %s854, 7
      %s857 = smul.addr %s856, 8
      %s858 = scalar_lea.vmem %s8, %s857
      %s859 = smul.u32 4, %s21
      %p860 = scmp.lt.s32.totalorder %s859, 7
      %s861 = scalar_select %p860, %s859, 7
      %s862 = smul.addr %s861, 4
      %s863 = scalar_lea.vmem %s9, %s862
      // Predicated region
      $region53: #{tpu_custom_call.1} parent=51 // pred_check
        %p864 = pneg %p217
      $region54: #{tpu_custom_call.1} parent=51 // pred_check_branch
        %866 = sbr.rel (%p864) target = $region56
      $region55: #{tpu_custom_call.1} parent=51 // pred_region
        %s867 = smul.u32 4, %s21
      $region56: #{tpu_custom_call.1} parent=51 // pred_fallthru
        _
      // Predicated region
      $region57: #{tpu_custom_call.1} parent=51 // pred_check
        %p868 = pneg %p243
      $region58: #{tpu_custom_call.1} parent=51 // pred_check_branch
        %870 = sbr.rel (%p868) target = $region60
      $region59: #{tpu_custom_call.1} parent=51 // pred_region
        %s871 = smul.u32 4, %s21
      $region60: #{tpu_custom_call.1} parent=51 // pred_fallthru
        _
    $region52: #{tpu_custom_call.1} parent=5 // pred_fallthru
      _
    %p872 = scmp.le.s32.totalorder 2, %s16
    // Predicated region
    $region61: #{tpu_custom_call.1} parent=5 // pred_check
      %p873 = pneg %p872
    $region62: #{tpu_custom_call.1} parent=5 // pred_check_branch
      %875 = sbr.rel (%p873) target = $region64
    $region63: #{tpu_custom_call.1} parent=5 // pred_region
      %s876 = ssub.s32 %s16, 2
      // Predicated region
      $region65: #{tpu_custom_call.1} parent=63 // pred_check
        %p877 = pneg %p223
      $region66: #{tpu_custom_call.1} parent=63 // pred_check_branch
        %879 = sbr.rel (%p877) target = $region68
      $region67: #{tpu_custom_call.1} parent=63 // pred_region
        %s880 = smul.u32 4, %s22
        %p881 = scmp.lt.s32.totalorder %s880, 7
        %s882 = scalar_select %p881, %s880, 7
        %s883 = smul.addr %s882, 8
        %s884 = scalar_lea.vmem %s8, %s883
      $region68: #{tpu_custom_call.1} parent=63 // pred_fallthru
        _
      // Predicated region
      $region69: #{tpu_custom_call.1} parent=63 // pred_check
        %p885 = pneg %p249
      $region70: #{tpu_custom_call.1} parent=63 // pred_check_branch
        %887 = sbr.rel (%p885) target = $region72
      $region71: #{tpu_custom_call.1} parent=63 // pred_region
        %s888 = smul.u32 4, %s22
        %p889 = scmp.lt.s32.totalorder %s888, 7
        %s890 = scalar_select %p889, %s888, 7
        %s891 = smul.addr %s890, 4
        %s892 = scalar_lea.vmem %s9, %s891
      $region72: #{tpu_custom_call.1} parent=63 // pred_fallthru
        _
    $region64: #{tpu_custom_call.1} parent=5 // pred_fallthru
      _
  $region6: #{tpu_custom_call.1} parent=0 // loop_footer
    %s20 = sadd.s32 1, %s16
  $region7: #{tpu_custom_call.1} parent=0 // loop_footer_branch
    %15 = sbr.rel target = $region3
  $region8: #{tpu_custom_call.1} parent=0 // loop_exit
    _

// kernel: tpu_custom_call.1
$region0: #{tpu_custom_call.1}
  #allocation0 [shape = 'u32[]', space=smem, size = 0x4, offset = 0x4, fixed_abs, tag = 'smem constant byte address 0x4 - core index']
  #allocation1 [shape = 'u32[72,128]{1,0:T(1,128)}', space=vmem, size = 0x9000, scoped, tag = 'internal scratch']
  %s0 = inlined_call_operand.vmem [shape: bf16[128,32], index: 0, kind: input, shape index: {}]
  %s1 = inlined_call_operand.vmem [shape: f32[8,1,16], index: 1, kind: input, shape index: {}]
  %s2 = inlined_call_operand.vmem [shape: bf16[32,16], index: 2, kind: input, shape index: {}]
  %s3 = inlined_call_operand.vmem [shape: f32[1,16], index: 3, kind: input, shape index: {}]
  %s4 = inlined_call_operand.vmem [shape: bf16[16,8], index: 4, kind: input, shape index: {}]
  %s5 = inlined_call_operand.vmem [shape: f32[1,8], index: 5, kind: input, shape index: {}]
  %s6 = inlined_call_operand.vmem [shape: bf16[32,32], index: 6, kind: input, shape index: {}]
  %s7 = inlined_call_operand.vmem [shape: f32[1,32], index: 7, kind: input, shape index: {}]
  %s8 = inlined_call_operand.vmem [shape: f32[64,32], index: 8, kind: output, shape index: {0}]
  %s9 = inlined_call_operand.vmem [shape: bf16[64,16], index: 9, kind: output, shape index: {1}]
  %10 = xla_tuple %s8, %s9
  %s11 = sld [smem:[#allocation0]]
  $region73: #{tpu_custom_call.1} parent=0
    _
  %s13 = ssub.s32 1, %s11
  %s14 = scalar_select 0, %s13, %s11
  loop: start=0, step=1, limit=4
  $region2: #{tpu_custom_call.1} parent=0 // loop_pre_header
    _
  $region3: #{tpu_custom_call.1} parent=0 // loop_header
    %s16 = sphi 0, %s20
    %p17 = scmp.ge.s32.totalorder %s16, 4
    %s26 = sphi 0, %s28
    %s29 = sphi 0, %s26
    %s30 = sphi 0, %s29
    %s46 = sphi 0, %s30
    %s52 = sphi 0, %s54
    %s55 = sphi 0, %s52
    %s56 = sphi 0, %s55
    %s72 = sphi 0, %s56
    %s76 = sphi 0, %s76
    %s78 = sphi 0, %s76
    %s79 = sphi 0, %s78
    %s93 = sphi 0, %s79
    %s97 = sphi 0, %s97
    %s99 = sphi 0, %s97
    %s100 = sphi 0, %s99
    %s114 = sphi 0, %s100
    %s118 = sphi 0, %s118
    %s120 = sphi 0, %s118
    %s121 = sphi 0, %s120
    %s135 = sphi 0, %s121
    %s139 = sphi 0, %s139
    %s141 = sphi 0, %s139
    %s142 = sphi 0, %s141
    %s156 = sphi 0, %s142
    %s160 = sphi 0, %s160
    %s162 = sphi 0, %s160
    %s163 = sphi 0, %s162
    %s177 = sphi 0, %s163
    %s181 = sphi 0, %s181
    %s183 = sphi 0, %s181
    %s184 = sphi 0, %s183
    %s198 = sphi 0, %s184
    %s204 = sphi 0, %s206
    %s207 = sphi 0, %s204
    %s208 = sphi 0, %s207
    %s224 = sphi 0, %s208
    %s230 = sphi 0, %s232
    %s233 = sphi 0, %s230
    %s234 = sphi 0, %s233
    %s250 = sphi 0, %s234
  $region4: #{tpu_custom_call.1} parent=0 // loop_header_branch
    %19 = sbr.rel (%p17) target = $region8
  $region5: #{tpu_custom_call.1} parent=0 // loop_body
    %s21 = ssub.s32 %s16, 1
    %s22 = ssub.s32 %s16, 2
    %s23 = sadd.s32 %s16, 1
    %s24 = ssub.s32 %s16, %s23
    %p25 = scmp.eq.s32.totalorder %s24, 0
    %s27 = sadd.s32 %s26, 1
    %s28 = scalar_select %p25, %s26, %s27
    %p31 = pneg %p25
    %p32 = scmp.eq.s32.totalorder %s16, 1
    %p33 = por %p31, %p32
    %p34 = scmp.ne.s32.totalorder %s26, %s29
    %p35 = scmp.eq.s32.totalorder %s16, 0
    %p36 = por %p34, %p35
    %p37 = scmp.ne.s32.totalorder %s26, %s29
    %p38 = scmp.eq.s32.totalorder %s21, 1
    %p39 = por %p37, %p38
    %p40 = scmp.ne.s32.totalorder %s29, %s30
    %p41 = scmp.eq.s32.totalorder %s21, 0
    %p42 = por %p40, %p41
    %p43 = scmp.ne.s32.totalorder %s29, %s30
    %p44 = scmp.eq.s32.totalorder %s22, 1
    %p45 = por %p43, %p44
    %p47 = scmp.ne.s32.totalorder %s30, %s46
    %p48 = scmp.eq.s32.totalorder %s22, 0
    %p49 = por %p47, %p48
    %s50 = ssub.s32 %s16, %s23
    %p51 = scmp.eq.s32.totalorder %s50, 0
    %s53 = sadd.s32 %s52, 1
    %s54 = scalar_select %p51, %s52, %s53
    %p57 = pneg %p51
    %p58 = scmp.eq.s32.totalorder %s16, 1
    %p59 = por %p57, %p58
    %p60 = scmp.ne.s32.totalorder %s52, %s55
    %p61 = scmp.eq.s32.totalorder %s16, 0
    %p62 = por %p60, %p61
    %p63 = scmp.ne.s32.totalorder %s52, %s55
    %p64 = scmp.eq.s32.totalorder %s21, 1
    %p65 = por %p63, %p64
    %p66 = scmp.ne.s32.totalorder %s55, %s56
    %p67 = scmp.eq.s32.totalorder %s21, 0
    %p68 = por %p66, %p67
    %p69 = scmp.ne.s32.totalorder %s55, %s56
    %p70 = scmp.eq.s32.totalorder %s22, 1
    %p71 = por %p69, %p70
    %p73 = scmp.ne.s32.totalorder %s56, %s72
    %p74 = scmp.eq.s32.totalorder %s22, 0
    %p75 = por %p73, %p74
    %s77 = sadd.s32 %s76, 1
    %p80 = scmp.eq.s32.totalorder %s16, 1
    %p81 = scmp.ne.s32.totalorder %s76, %s78
    %p82 = scmp.eq.s32.totalorder %s16, 0
    %p83 = por %p81, %p82
    %p84 = scmp.ne.s32.totalorder %s76, %s78
    %p85 = scmp.eq.s32.totalorder %s21, 1
    %p86 = por %p84, %p85
    %p87 = scmp.ne.s32.totalorder %s78, %s79
    %p88 = scmp.eq.s32.totalorder %s21, 0
    %p89 = por %p87, %p88
    %p90 = scmp.ne.s32.totalorder %s78, %s79
    %p91 = scmp.eq.s32.totalorder %s22, 1
    %p92 = por %p90, %p91
    %p94 = scmp.ne.s32.totalorder %s79, %s93
    %p95 = scmp.eq.s32.totalorder %s22, 0
    %p96 = por %p94, %p95
    %s98 = sadd.s32 %s97, 1
    %p101 = scmp.eq.s32.totalorder %s16, 1
    %p102 = scmp.ne.s32.totalorder %s97, %s99
    %p103 = scmp.eq.s32.totalorder %s16, 0
    %p104 = por %p102, %p103
    %p105 = scmp.ne.s32.totalorder %s97, %s99
    %p106 = scmp.eq.s32.totalorder %s21, 1
    %p107 = por %p105, %p106
    %p108 = scmp.ne.s32.totalorder %s99, %s100
    %p109 = scmp.eq.s32.totalorder %s21, 0
    %p110 = por %p108, %p109
    %p111 = scmp.ne.s32.totalorder %s99, %s100
    %p112 = scmp.eq.s32.totalorder %s22, 1
    %p113 = por %p111, %p112
    %p115 = scmp.ne.s32.totalorder %s100, %s114
    %p116 = scmp.eq.s32.totalorder %s22, 0
    %p117 = por %p115, %p116
    %s119 = sadd.s32 %s118, 1
    %p122 = scmp.eq.s32.totalorder %s16, 1
    %p123 = scmp.ne.s32.totalorder %s118, %s120
    %p124 = scmp.eq.s32.totalorder %s16, 0
    %p125 = por %p123, %p124
    %p126 = scmp.ne.s32.totalorder %s118, %s120
    %p127 = scmp.eq.s32.totalorder %s21, 1
    %p128 = por %p126, %p127
    %p129 = scmp.ne.s32.totalorder %s120, %s121
    %p130 = scmp.eq.s32.totalorder %s21, 0
    %p131 = por %p129, %p130
    %p132 = scmp.ne.s32.totalorder %s120, %s121
    %p133 = scmp.eq.s32.totalorder %s22, 1
    %p134 = por %p132, %p133
    %p136 = scmp.ne.s32.totalorder %s121, %s135
    %p137 = scmp.eq.s32.totalorder %s22, 0
    %p138 = por %p136, %p137
    %s140 = sadd.s32 %s139, 1
    %p143 = scmp.eq.s32.totalorder %s16, 1
    %p144 = scmp.ne.s32.totalorder %s139, %s141
    %p145 = scmp.eq.s32.totalorder %s16, 0
    %p146 = por %p144, %p145
    %p147 = scmp.ne.s32.totalorder %s139, %s141
    %p148 = scmp.eq.s32.totalorder %s21, 1
    %p149 = por %p147, %p148
    %p150 = scmp.ne.s32.totalorder %s141, %s142
    %p151 = scmp.eq.s32.totalorder %s21, 0
    %p152 = por %p150, %p151
    %p153 = scmp.ne.s32.totalorder %s141, %s142
    %p154 = scmp.eq.s32.totalorder %s22, 1
    %p155 = por %p153, %p154
    %p157 = scmp.ne.s32.totalorder %s142, %s156
    %p158 = scmp.eq.s32.totalorder %s22, 0
    %p159 = por %p157, %p158
    %s161 = sadd.s32 %s160, 1
    %p164 = scmp.eq.s32.totalorder %s16, 1
    %p165 = scmp.ne.s32.totalorder %s160, %s162
    %p166 = scmp.eq.s32.totalorder %s16, 0
    %p167 = por %p165, %p166
    %p168 = scmp.ne.s32.totalorder %s160, %s162
    %p169 = scmp.eq.s32.totalorder %s21, 1
    %p170 = por %p168, %p169
    %p171 = scmp.ne.s32.totalorder %s162, %s163
    %p172 = scmp.eq.s32.totalorder %s21, 0
    %p173 = por %p171, %p172
    %p174 = scmp.ne.s32.totalorder %s162, %s163
    %p175 = scmp.eq.s32.totalorder %s22, 1
    %p176 = por %p174, %p175
    %p178 = scmp.ne.s32.totalorder %s163, %s177
    %p179 = scmp.eq.s32.totalorder %s22, 0
    %p180 = por %p178, %p179
    %s182 = sadd.s32 %s181, 1
    %p185 = scmp.eq.s32.totalorder %s16, 1
    %p186 = scmp.ne.s32.totalorder %s181, %s183
    %p187 = scmp.eq.s32.totalorder %s16, 0
    %p188 = por %p186, %p187
    %p189 = scmp.ne.s32.totalorder %s181, %s183
    %p190 = scmp.eq.s32.totalorder %s21, 1
    %p191 = por %p189, %p190
    %p192 = scmp.ne.s32.totalorder %s183, %s184
    %p193 = scmp.eq.s32.totalorder %s21, 0
    %p194 = por %p192, %p193
    %p195 = scmp.ne.s32.totalorder %s183, %s184
    %p196 = scmp.eq.s32.totalorder %s22, 1
    %p197 = por %p195, %p196
    %p199 = scmp.ne.s32.totalorder %s184, %s198
    %p200 = scmp.eq.s32.totalorder %s22, 0
    %p201 = por %p199, %p200
    %s202 = ssub.s32 %s16, %s23
    %p203 = scmp.eq.s32.totalorder %s202, 0
    %s205 = sadd.s32 %s204, 1
    %s206 = scalar_select %p203, %s204, %s205
    %p209 = pneg %p203
    %p210 = scmp.eq.s32.totalorder %s16, 1
    %p211 = por %p209, %p210
    %p212 = scmp.ne.s32.totalorder %s204, %s207
    %p213 = scmp.eq.s32.totalorder %s16, 0
    %p214 = por %p212, %p213
    %p215 = scmp.ne.s32.totalorder %s204, %s207
    %p216 = scmp.eq.s32.totalorder %s21, 1
    %p217 = por %p215, %p216
    %p218 = scmp.ne.s32.totalorder %s207, %s208
    %p219 = scmp.eq.s32.totalorder %s21, 0
    %p220 = por %p218, %p219
    %p221 = scmp.ne.s32.totalorder %s207, %s208
    %p222 = scmp.eq.s32.totalorder %s22, 1
    %p223 = por %p221, %p222
    %p225 = scmp.ne.s32.totalorder %s208, %s224
    %p226 = scmp.eq.s32.totalorder %s22, 0
    %p227 = por %p225, %p226
    %s228 = ssub.s32 %s16, %s23
    %p229 = scmp.eq.s32.totalorder %s228, 0
    %s231 = sadd.s32 %s230, 1
    %s232 = scalar_select %p229, %s230, %s231
    %p235 = pneg %p229
    %p236 = scmp.eq.s32.totalorder %s16, 1
    %p237 = por %p235, %p236
    %p238 = scmp.ne.s32.totalorder %s230, %s233
    %p239 = scmp.eq.s32.totalorder %s16, 0
    %p240 = por %p238, %p239
    %p241 = scmp.ne.s32.totalorder %s230, %s233
    %p242 = scmp.eq.s32.totalorder %s21, 1
    %p243 = por %p241, %p242
    %p244 = scmp.ne.s32.totalorder %s233, %s234
    %p245 = scmp.eq.s32.totalorder %s21, 0
    %p246 = por %p244, %p245
    %p247 = scmp.ne.s32.totalorder %s233, %s234
    %p248 = scmp.eq.s32.totalorder %s22, 1
    %p249 = por %p247, %p248
    %p251 = scmp.ne.s32.totalorder %s234, %s250
    %p252 = scmp.eq.s32.totalorder %s22, 0
    %p253 = por %p251, %p252
    %p254 = scmp.le.s32.totalorder 1, %s16
    %p255 = scmp.lt.s32.totalorder %s16, 3
    %p256 = pnand %p254, %p255
    %p257 = pneg %p256
    // Predicated region
    $region9: #{tpu_custom_call.1} parent=5 // pred_check
      _
    $region10: #{tpu_custom_call.1} parent=5 // pred_check_branch
      %259 = sbr.rel (%p256) target = $region12
    $region11: #{tpu_custom_call.1} parent=5 // pred_region
      %s260 = ssub.s32 %s16, 1
      // Predicated region
      $region13: #{tpu_custom_call.1} parent=11 // pred_check
        %p261 = pneg %p89
      $region14: #{tpu_custom_call.1} parent=11 // pred_check_branch
        %263 = sbr.rel (%p261) target = $region16
      $region15: #{tpu_custom_call.1} parent=11 // pred_region
        _
      $region16: #{tpu_custom_call.1} parent=11 // pred_fallthru
        _
      // Predicated region
      $region17: #{tpu_custom_call.1} parent=11 // pred_check
        %p264 = pneg %p110
      $region18: #{tpu_custom_call.1} parent=11 // pred_check_branch
        %266 = sbr.rel (%p264) target = $region20
      $region19: #{tpu_custom_call.1} parent=11 // pred_region
        _
      $region20: #{tpu_custom_call.1} parent=11 // pred_fallthru
        _
      // Predicated region
      $region21: #{tpu_custom_call.1} parent=11 // pred_check
        %p267 = pneg %p131
      $region22: #{tpu_custom_call.1} parent=11 // pred_check_branch
        %269 = sbr.rel (%p267) target = $region24
      $region23: #{tpu_custom_call.1} parent=11 // pred_region
        _
      $region24: #{tpu_custom_call.1} parent=11 // pred_fallthru
        _
      // Predicated region
      $region25: #{tpu_custom_call.1} parent=11 // pred_check
        %p270 = pneg %p152
      $region26: #{tpu_custom_call.1} parent=11 // pred_check_branch
        %272 = sbr.rel (%p270) target = $region28
      $region27: #{tpu_custom_call.1} parent=11 // pred_region
        _
      $region28: #{tpu_custom_call.1} parent=11 // pred_fallthru
        _
      // Predicated region
      $region29: #{tpu_custom_call.1} parent=11 // pred_check
        %p273 = pneg %p173
      $region30: #{tpu_custom_call.1} parent=11 // pred_check_branch
        %275 = sbr.rel (%p273) target = $region32
      $region31: #{tpu_custom_call.1} parent=11 // pred_region
        _
      $region32: #{tpu_custom_call.1} parent=11 // pred_fallthru
        _
      // Predicated region
      $region33: #{tpu_custom_call.1} parent=11 // pred_check
        %p276 = pneg %p194
      $region34: #{tpu_custom_call.1} parent=11 // pred_check_branch
        %278 = sbr.rel (%p276) target = $region36
      $region35: #{tpu_custom_call.1} parent=11 // pred_region
        _
      $region36: #{tpu_custom_call.1} parent=11 // pred_fallthru
        _
    $region12: #{tpu_custom_call.1} parent=5 // pred_fallthru
      _
    %p279 = scmp.lt.s32.totalorder %s16, 2
    // Predicated region
    $region37: #{tpu_custom_call.1} parent=5 // pred_check
      %p280 = pneg %p279
    $region38: #{tpu_custom_call.1} parent=5 // pred_check_branch
      %282 = sbr.rel (%p280) target = $region40
    $region39: #{tpu_custom_call.1} parent=5 // pred_region
      // Predicated region
      $region41: #{tpu_custom_call.1} parent=39 // pred_check
        %p283 = pneg %p36
      $region42: #{tpu_custom_call.1} parent=39 // pred_check_branch
        %285 = sbr.rel (%p283) target = $region44
      $region43: #{tpu_custom_call.1} parent=39 // pred_region
        %s286 = smul.u32 8, %s16
        %p287 = scmp.lt.s32.totalorder %s286, 15
        %s288 = scalar_select %p287, %s286, 15
        %s289 = smul.addr %s288, 4
        %s290 = scalar_lea.vmem %s0, %s289
        %s291 = smul.u32 8, %s16
      $region44: #{tpu_custom_call.1} parent=39 // pred_fallthru
        _
      // Predicated region
      $region45: #{tpu_custom_call.1} parent=39 // pred_check
        %p292 = pneg %p62
      $region46: #{tpu_custom_call.1} parent=39 // pred_check_branch
        %294 = sbr.rel (%p292) target = $region48
      $region47: #{tpu_custom_call.1} parent=39 // pred_region
        %s295 = smul.u32 4, %s16
        %p296 = scmp.lt.s32.totalorder %s295, 7
        %s297 = scalar_select %p296, %s295, 7
        %s298 = scalar_lea.vmem %s1, %s297
        %s299 = smul.u32 4, %s16
      $region48: #{tpu_custom_call.1} parent=39 // pred_fallthru
        _
    $region40: #{tpu_custom_call.1} parent=5 // pred_fallthru
      _
    %p300 = scmp.le.s32.totalorder 1, %s16
    %p301 = scmp.lt.s32.totalorder %s16, 3
    %p302 = pnand %p300, %p301
    %p303 = pneg %p302
    // Predicated region
    $region49: #{tpu_custom_call.1} parent=5 // pred_check
      _
    $region50: #{tpu_custom_call.1} parent=5 // pred_check_branch
      %305 = sbr.rel (%p302) target = $region52
    $region51: #{tpu_custom_call.1} parent=5 // pred_region
      %s306 = ssub.s32 %s16, 1
      %s307 = smul.u32 8, %s21
      %p308 = scmp.lt.s32.totalorder %s307, 15
      %s309 = scalar_select %p308, %s307, 15
      %s310 = smul.addr %s309, 4
      %s311 = scalar_lea.vmem %s0, %s310
      %p312 = pneg %p42
      %p313 = pneg %p39
      %s314 = smul.u32 4, %s21
      %p315 = scmp.lt.s32.totalorder %s314, 7
      %s316 = scalar_select %p315, %s314, 7
      %s317 = scalar_lea.vmem %s1, %s316
      %p318 = pneg %p68
      %p319 = pneg %p65
      %p320 = pneg %p89
      %p321 = pneg %p86
      %p322 = pneg %p110
      %p323 = pneg %p107
      %p324 = pneg %p131
      %p325 = pneg %p128
      %p326 = pneg %p152
      %p327 = pneg %p149
      %p328 = pneg %p173
      %p329 = pneg %p170
      %p330 = pneg %p194
      %p331 = pneg %p191
      %p332 = pneg %p220
      %p333 = pneg %p217
      %s334 = smul.u32 4, %s21
      %p335 = scmp.lt.s32.totalorder %s334, 7
      %s336 = scalar_select %p335, %s334, 7
      %s337 = smul.addr %s336, 8
      %s338 = scalar_lea.vmem %s8, %s337
      %p339 = pneg %p246
      %p340 = pneg %p243
      %s341 = smul.u32 4, %s21
      %p342 = scmp.lt.s32.totalorder %s341, 7
      %s343 = scalar_select %p342, %s341, 7
      %s344 = smul.addr %s343, 4
      %s345 = scalar_lea.vmem %s9, %s344
      %s346 = smul.u32 8, %s21
      %p347 = scmp.lt.s32.totalorder %s346, 15
      %s348 = scalar_select %p347, %s346, 15
      %s349 = smul.addr %s348, 4
      %s350 = scalar_lea.vmem %s0, %s349
      %s351 = smul.u32 8, %s21
      %s352 = smul.u32 4, %s21
      %p353 = scmp.lt.s32.totalorder %s352, 7
      %s354 = scalar_select %p353, %s352, 7
      %s355 = scalar_lea.vmem %s1, %s354
      %s356 = smul.u32 4, %s21
      %s357 = smul.u32 4, %s21
      %p358 = scmp.lt.s32.totalorder %s357, 7
      %s359 = scalar_select %p358, %s357, 7
      %s360 = smul.addr %s359, 8
      %s361 = scalar_lea.vmem %s8, %s360
      %s362 = smul.u32 4, %s21
      %s363 = smul.u32 4, %s21
      %p364 = scmp.lt.s32.totalorder %s363, 7
      %s365 = scalar_select %p364, %s363, 7
      %s366 = smul.addr %s365, 4
      %s367 = scalar_lea.vmem %s9, %s366
      %s368 = smul.u32 4, %s21
      %v370 = vld [vmem:[%s350] sm:$0xf]
      %v371 = vld [vmem:[%s350 + $0x4] sm:$0xf]
      %v372 = vld [vmem:[%s350 + $0x8] sm:$0xf]
      %v373 = vld [vmem:[%s350 + $0xc] sm:$0xf]
      %v374 = vld [vmem:[%s350 + $0x10] sm:$0xf]
      %v375 = vld [vmem:[%s350 + $0x14] sm:$0xf]
      %v376 = vld [vmem:[%s350 + $0x18] sm:$0xf]
      %v377 = vld [vmem:[%s350 + $0x1c] sm:$0xf]
      %v378 = vld [vmem:[%s2] sm:$0xf]
      %v379 = vld [vmem:[%s2 + $0x4] sm:$0xf]
      %v380 = vld [vmem:[%s2 + $0x8] sm:$0xf]
      %v381 = vld [vmem:[%s2 + $0xc] sm:$0xf]
      %v382 = vld [vmem:[%s3] sm:$0x1]
      %v384 = vperm.slane %v382, 0
      %v394 = vunpack.c.l.b16 %v370
      %v395 = vunpack.c.l.b16 %v371
      %v396 = vunpack.c.l.b16 %v372
      %v397 = vunpack.c.l.b16 %v373
      %v398 = vunpack.c.l.b16 %v374
      %v399 = vunpack.c.l.b16 %v375
      %v400 = vunpack.c.l.b16 %v376
      %v401 = vunpack.c.l.b16 %v377
      %v402 = vpack.c.b16 %v395, %v394
      %v403 = vpack.c.b16 %v397, %v396
      %v404 = vpack.c.b16 %v399, %v398
      %v405 = vpack.c.b16 %v401, %v400
      %v410 = vunpack.c.l.b16 %v378
      %v411 = vunpack.c.l.b16 %v379
      %v412 = vunpack.c.l.b16 %v380
      %v413 = vunpack.c.l.b16 %v381
      %v414 = vpack.c.b16 %v411, %v410
      %v415 = vpack.c.b16 %v413, %v412
      %vm418 = vcmask 261120
      %v420 = vsel %vm418, %v402, 0
      %v423 = vsel %vm418, %v403, 0
      %v426 = vsel %vm418, %v404, 0
      %v429 = vsel %vm418, %v405, 0
      %431 = vmatpush.bf16.msra.mxu0 0
      %432 = vmatpush.bf16.msra.mxu0 0
      %433 = vmatpush.bf16.msra.mxu0 0
      %434 = vmatpush.bf16.msra.mxu0 0
      %435 = vmatpush.bf16.msra.mxu0 0
      %436 = vmatpush.bf16.msra.mxu0 0
      %437 = vmatpush.bf16.msra.mxu0 %v415
      %438 = vmatpush.bf16.msra.mxu0 %v414
      %439 = vmatmul.bf16.gmra.mxu0 %v420
      %v440 = vpop.f32.mrf.mxu0
      %v441 = vadd.f32 %v384, %v440
      %v442 = vpop.f32.mrf.mxu0
      %v443 = vadd.f32 %v384, %v442
      %444 = vmatmul.bf16.gmra.mxu0 %v423
      %v445 = vpop.f32.mrf.mxu0
      %v446 = vadd.f32 %v384, %v445
      %v447 = vpop.f32.mrf.mxu0
      %v448 = vadd.f32 %v384, %v447
      %449 = vmatmul.bf16.gmra.mxu0 %v426
      %v450 = vpop.f32.mrf.mxu0
      %v451 = vadd.f32 %v384, %v450
      %v452 = vpop.f32.mrf.mxu0
      %v453 = vadd.f32 %v384, %v452
      %454 = vmatmul.bf16.gmra.mxu0 %v429
      %v455 = vpop.f32.mrf.mxu0
      %v456 = vadd.f32 %v384, %v455
      %v457 = vpop.f32.mrf.mxu0
      %v458 = vadd.f32 %v384, %v457
      %459 = vdwg.mxu0
      %v460 = vtanh.pop %v441
      %v461 = vtanh.pop %v443
      %v462 = vtanh.pop %v446
      %v463 = vtanh.pop %v448
      %v464 = vtanh.pop %v451
      %v465 = vtanh.pop %v453
      %v466 = vtanh.pop %v456
      %v467 = vtanh.pop %v458
      %v468 = vpack.c.bf16 %v461, %v460
      %v469 = vpack.c.bf16 %v463, %v462
      %v470 = vpack.c.bf16 %v465, %v464
      %v471 = vpack.c.bf16 %v467, %v466
      %v472 = vld [vmem:[%s4] sm:$0xf]
      %v473 = vld [vmem:[%s4 + $0x4] sm:$0xf]
      %v474 = vld [vmem:[%s5] sm:$0x1]
      %v476 = vperm.slane %v474, 0
      %v480 = vunpack.c.l.b16 %v472
      %v481 = vunpack.c.l.b16 %v473
      %v482 = vpack.c.b16 %v481, %v480
      %vm484 = vcmask 130048
      %v486 = vsel %vm484, %v468, 0
      %v489 = vsel %vm484, %v469, 0
      %v492 = vsel %vm484, %v470, 0
      %v495 = vsel %vm484, %v471, 0
      %497 = vmatpush.bf16.msra.mxu0 0
      %498 = vmatpush.bf16.msra.mxu0 0
      %499 = vmatpush.bf16.msra.mxu0 0
      %500 = vmatpush.bf16.msra.mxu0 0
      %501 = vmatpush.bf16.msra.mxu0 0
      %502 = vmatpush.bf16.msra.mxu0 0
      %503 = vmatpush.bf16.msra.mxu0 0
      %504 = vmatpush.bf16.msra.mxu0 %v482
      %505 = vmatmul.bf16.gmra.mxu0 %v486
      %v506 = vpop.f32.mrf.mxu0
      %v507 = vadd.f32 %v476, %v506
      %v508 = vpop.f32.mrf.mxu0
      %v509 = vadd.f32 %v476, %v508
      %510 = vmatmul.bf16.gmra.mxu0 %v489
      %v511 = vpop.f32.mrf.mxu0
      %v512 = vadd.f32 %v476, %v511
      %v513 = vpop.f32.mrf.mxu0
      %v514 = vadd.f32 %v476, %v513
      %515 = vmatmul.bf16.gmra.mxu0 %v492
      %v516 = vpop.f32.mrf.mxu0
      %v517 = vadd.f32 %v476, %v516
      %v518 = vpop.f32.mrf.mxu0
      %v519 = vadd.f32 %v476, %v518
      %520 = vmatmul.bf16.gmra.mxu0 %v495
      %v521 = vpop.f32.mrf.mxu0
      %v522 = vadd.f32 %v476, %v521
      %v523 = vpop.f32.mrf.mxu0
      %v524 = vadd.f32 %v476, %v523
      %525 = vdwg.mxu0
      %526 = vxpose.xlu0.b32.start [1/16] %v507, 128
      %527 = vxpose.xlu0.b32.cont [2/16] %v509, 128
      %528 = vxpose.xlu0.b32.cont [3/16] 0.0, 128
      %529 = vxpose.xlu0.b32.cont [4/16] 0.0, 128
      %530 = vxpose.xlu0.b32.cont [5/16] 0.0, 128
      %531 = vxpose.xlu0.b32.cont [6/16] 0.0, 128
      %532 = vxpose.xlu0.b32.cont [7/16] 0.0, 128
      %533 = vxpose.xlu0.b32.cont [8/16] 0.0, 128
      %534 = vxpose.xlu0.b32.cont [9/16] 0.0, 128
      %535 = vxpose.xlu0.b32.cont [10/16] 0.0, 128
      %536 = vxpose.xlu0.b32.cont [11/16] 0.0, 128
      %537 = vxpose.xlu0.b32.cont [12/16] 0.0, 128
      %538 = vxpose.xlu0.b32.cont [13/16] 0.0, 128
      %539 = vxpose.xlu0.b32.cont [14/16] 0.0, 128
      %540 = vxpose.xlu0.b32.cont [15/16] 0.0, 128
      %541 = vxpose.xlu0.b32.end [16/16] 0.0, 128
      %v542 = vpop.trf.xlu0
      %v543 = vpop.trf.xlu0
      %v544 = vpop.trf.xlu0
      %v545 = vpop.trf.xlu0
      %v546 = vpop.trf.xlu0
      %v547 = vpop.trf.xlu0
      %v548 = vpop.trf.xlu0
      %v549 = vpop.trf.xlu0
      %v550 = vpop.trf.xlu0
      %v551 = vpop.trf.xlu0
      %v552 = vpop.trf.xlu0
      %v553 = vpop.trf.xlu0
      %v554 = vpop.trf.xlu0
      %v555 = vpop.trf.xlu0
      %v556 = vpop.trf.xlu0
      %v557 = vpop.trf.xlu0
      %558 = vxpose.xlu0.b32.start [1/16] %v512, 128
      %559 = vxpose.xlu0.b32.cont [2/16] %v514, 128
      %560 = vxpose.xlu0.b32.cont [3/16] 0.0, 128
      %561 = vxpose.xlu0.b32.cont [4/16] 0.0, 128
      %562 = vxpose.xlu0.b32.cont [5/16] 0.0, 128
      %563 = vxpose.xlu0.b32.cont [6/16] 0.0, 128
      %564 = vxpose.xlu0.b32.cont [7/16] 0.0, 128
      %565 = vxpose.xlu0.b32.cont [8/16] 0.0, 128
      %566 = vxpose.xlu0.b32.cont [9/16] 0.0, 128
      %567 = vxpose.xlu0.b32.cont [10/16] 0.0, 128
      %568 = vxpose.xlu0.b32.cont [11/16] 0.0, 128
      %569 = vxpose.xlu0.b32.cont [12/16] 0.0, 128
      %570 = vxpose.xlu0.b32.cont [13/16] 0.0, 128
      %571 = vxpose.xlu0.b32.cont [14/16] 0.0, 128
      %572 = vxpose.xlu0.b32.cont [15/16] 0.0, 128
      %573 = vxpose.xlu0.b32.end [16/16] 0.0, 128
      %v574 = vpop.trf.xlu0
      %v575 = vpop.trf.xlu0
      %v576 = vpop.trf.xlu0
      %v577 = vpop.trf.xlu0
      %v578 = vpop.trf.xlu0
      %v579 = vpop.trf.xlu0
      %v580 = vpop.trf.xlu0
      %v581 = vpop.trf.xlu0
      %v582 = vpop.trf.xlu0
      %v583 = vpop.trf.xlu0
      %v584 = vpop.trf.xlu0
      %v585 = vpop.trf.xlu0
      %v586 = vpop.trf.xlu0
      %v587 = vpop.trf.xlu0
      %v588 = vpop.trf.xlu0
      %v589 = vpop.trf.xlu0
      %590 = vxpose.xlu0.b32.start [1/16] %v517, 128
      %591 = vxpose.xlu0.b32.cont [2/16] %v519, 128
      %592 = vxpose.xlu0.b32.cont [3/16] 0.0, 128
      %593 = vxpose.xlu0.b32.cont [4/16] 0.0, 128
      %594 = vxpose.xlu0.b32.cont [5/16] 0.0, 128
      %595 = vxpose.xlu0.b32.cont [6/16] 0.0, 128
      %596 = vxpose.xlu0.b32.cont [7/16] 0.0, 128
      %597 = vxpose.xlu0.b32.cont [8/16] 0.0, 128
      %598 = vxpose.xlu0.b32.cont [9/16] 0.0, 128
      %599 = vxpose.xlu0.b32.cont [10/16] 0.0, 128
      %600 = vxpose.xlu0.b32.cont [11/16] 0.0, 128
      %601 = vxpose.xlu0.b32.cont [12/16] 0.0, 128
      %602 = vxpose.xlu0.b32.cont [13/16] 0.0, 128
      %603 = vxpose.xlu0.b32.cont [14/16] 0.0, 128
      %604 = vxpose.xlu0.b32.cont [15/16] 0.0, 128
      %605 = vxpose.xlu0.b32.end [16/16] 0.0, 128
      %v606 = vpop.trf.xlu0
      %v607 = vpop.trf.xlu0
      %v608 = vpop.trf.xlu0
      %v609 = vpop.trf.xlu0
      %v610 = vpop.trf.xlu0
      %v611 = vpop.trf.xlu0
      %v612 = vpop.trf.xlu0
      %v613 = vpop.trf.xlu0
      %v614 = vpop.trf.xlu0
      %v615 = vpop.trf.xlu0
      %v616 = vpop.trf.xlu0
      %v617 = vpop.trf.xlu0
      %v618 = vpop.trf.xlu0
      %v619 = vpop.trf.xlu0
      %v620 = vpop.trf.xlu0
      %v621 = vpop.trf.xlu0
      %622 = vxpose.xlu0.b32.start [1/16] %v522, 128
      %623 = vxpose.xlu0.b32.cont [2/16] %v524, 128
      %624 = vxpose.xlu0.b32.cont [3/16] 0.0, 128
      %625 = vxpose.xlu0.b32.cont [4/16] 0.0, 128
      %626 = vxpose.xlu0.b32.cont [5/16] 0.0, 128
      %627 = vxpose.xlu0.b32.cont [6/16] 0.0, 128
      %628 = vxpose.xlu0.b32.cont [7/16] 0.0, 128
      %629 = vxpose.xlu0.b32.cont [8/16] 0.0, 128
      %630 = vxpose.xlu0.b32.cont [9/16] 0.0, 128
      %631 = vxpose.xlu0.b32.cont [10/16] 0.0, 128
      %632 = vxpose.xlu0.b32.cont [11/16] 0.0, 128
      %633 = vxpose.xlu0.b32.cont [12/16] 0.0, 128
      %634 = vxpose.xlu0.b32.cont [13/16] 0.0, 128
      %635 = vxpose.xlu0.b32.cont [14/16] 0.0, 128
      %636 = vxpose.xlu0.b32.cont [15/16] 0.0, 128
      %637 = vxpose.xlu0.b32.end [16/16] 0.0, 128
      %v638 = vpop.trf.xlu0
      %v639 = vpop.trf.xlu0
      %v640 = vpop.trf.xlu0
      %v641 = vpop.trf.xlu0
      %v642 = vpop.trf.xlu0
      %v643 = vpop.trf.xlu0
      %v644 = vpop.trf.xlu0
      %v645 = vpop.trf.xlu0
      %v646 = vpop.trf.xlu0
      %v647 = vpop.trf.xlu0
      %v648 = vpop.trf.xlu0
      %v649 = vpop.trf.xlu0
      %v650 = vpop.trf.xlu0
      %v651 = vpop.trf.xlu0
      %v652 = vpop.trf.xlu0
      %v653 = vpop.trf.xlu0
      %v654 = vld [vmem:[%s355] sm:$0x1]
      %v655 = vld [vmem:[%s355 + $0x1] sm:$0x1]
      %v656 = vld [vmem:[%s355 + $0x2] sm:$0x1]
      %v657 = vld [vmem:[%s355 + $0x3] sm:$0x1]
      %vm658 = vcmp.eq.f32.partialorder %v654, 0.0
      %vm659 = vcmp.eq.f32.partialorder %v655, 0.0
      %vm660 = vcmp.eq.f32.partialorder %v656, 0.0
      %vm661 = vcmp.eq.f32.partialorder %v657, 0.0
      %v662 = vsel %vm658, 1, 0
      %v663 = vsel %vm659, 1, 0
      %v664 = vsel %vm660, 1, 0
      %v665 = vsel %vm661, 1, 0
      %v666 = vperm.slane %v662, 0
      %v667 = vperm.slane %v663, 0
      %v668 = vperm.slane %v664, 0
      %v669 = vperm.slane %v665, 0
      %vm670 = vcmp.eq.s32.totalorder %v666, 1
      %vm671 = vcmp.eq.s32.totalorder %v667, 1
      %vm672 = vcmp.eq.s32.totalorder %v668, 1
      %vm673 = vcmp.eq.s32.totalorder %v669, 1
      %v674 = vsel %vm670, -10000.0, %v542
      %v675 = vsel %vm671, -10000.0, %v574
      %v676 = vsel %vm672, -10000.0, %v606
      %v677 = vsel %vm673, -10000.0, %v638
      %v678 = vsel %vm484, %v674, -inf
      %679 = vmax.xlane.f32.xlu0 %v678
      %v680 = vpop.xlane.xlu0 %679
      %v681 = vsel %vm484, %v675, -inf
      %682 = vmax.xlane.f32.xlu0 %v681
      %v683 = vpop.xlane.xlu0 %682
      %v684 = vsel %vm484, %v676, -inf
      %685 = vmax.xlane.f32.xlu0 %v684
      %v686 = vpop.xlane.xlu0 %685
      %v687 = vsel %vm484, %v677, -inf
      %688 = vmax.xlane.f32.xlu0 %v687
      %v689 = vpop.xlane.xlu0 %688
      %v690 = vsub.f32 %v674, %v680
      %v691 = vsub.f32 %v675, %v683
      %v692 = vsub.f32 %v676, %v686
      %v693 = vsub.f32 %v677, %v689
      %v694 = vmul.f32 %v690, 1.442695
      %v695 = vpow.pop %v694
      %v696 = vmul.f32 %v691, 1.442695
      %v697 = vpow.pop %v696
      %v698 = vmul.f32 %v692, 1.442695
      %v699 = vpow.pop %v698
      %v700 = vmul.f32 %v693, 1.442695
      %v701 = vpow.pop %v700
      %v702 = vsel %vm484, %v695, 0.0
      %703 = vadd.xlane.f32.xlu0 %v702
      %v704 = vpop.xlane.xlu0 %703
      %v705 = vsel %vm484, %v697, 0.0
      %706 = vadd.xlane.f32.xlu0 %v705
      %v707 = vpop.xlane.xlu0 %706
      %v708 = vsel %vm484, %v699, 0.0
      %709 = vadd.xlane.f32.xlu0 %v708
      %v710 = vpop.xlane.xlu0 %709
      %v711 = vsel %vm484, %v701, 0.0
      %712 = vadd.xlane.f32.xlu0 %v711
      %v713 = vpop.xlane.xlu0 %712
      %v714 = vrcp.pop %v704
      %v715 = vrcp.pop %v707
      %v716 = vrcp.pop %v710
      %v717 = vrcp.pop %v713
      %v718 = vmul.f32 %v695, %v714
      %v719 = vmul.f32 %v697, %v715
      %v720 = vmul.f32 %v699, %v716
      %v721 = vmul.f32 %v701, %v717
      %v722 = vsel %vm670, 0.0, %v718
      %v723 = vsel %vm671, 0.0, %v719
      %v724 = vsel %vm672, 0.0, %v720
      %v725 = vsel %vm673, 0.0, %v721
      %v726 = vpack.c.bf16 %v722, %v722
      %v727 = vpack.c.bf16 %v723, %v723
      %v728 = vpack.c.bf16 %v724, %v724
      %v729 = vpack.c.bf16 %v725, %v725
      %v732 = vsel %vm484, %v726, 0
      %734 = vmatpush.bf16.msra.mxu0 0
      %735 = vmatpush.bf16.msra.mxu0 0
      %736 = vmatpush.bf16.msra.mxu0 0
      %737 = vmatpush.bf16.msra.mxu0 0
      %738 = vmatpush.bf16.msra.mxu0 0
      %739 = vmatpush.bf16.msra.mxu0 0
      %740 = vmatpush.bf16.msra.mxu0 0
      %741 = vmatpush.bf16.msra.mxu0 %v402
      %742 = vmatmul.bf16.gmra.mxu0 %v732
      %v743 = vpop.f32.mrf.mxu0
      %v744 = vadd.f32 0.0, %v743
      %v745 = vpop.f32.mrf.mxu0
      %746 = vdwg.mxu0
      %v749 = vsel %vm484, %v727, 0
      %751 = vmatpush.bf16.msra.mxu0 0
      %752 = vmatpush.bf16.msra.mxu0 0
      %753 = vmatpush.bf16.msra.mxu0 0
      %754 = vmatpush.bf16.msra.mxu0 0
      %755 = vmatpush.bf16.msra.mxu0 0
      %756 = vmatpush.bf16.msra.mxu0 0
      %757 = vmatpush.bf16.msra.mxu0 0
      %758 = vmatpush.bf16.msra.mxu0 %v403
      %759 = vmatmul.bf16.gmra.mxu0 %v749
      %v760 = vpop.f32.mrf.mxu0
      %v761 = vadd.f32 0.0, %v760
      %v762 = vpop.f32.mrf.mxu0
      %763 = vdwg.mxu0
      %v766 = vsel %vm484, %v728, 0
      %768 = vmatpush.bf16.msra.mxu0 0
      %769 = vmatpush.bf16.msra.mxu0 0
      %770 = vmatpush.bf16.msra.mxu0 0
      %771 = vmatpush.bf16.msra.mxu0 0
      %772 = vmatpush.bf16.msra.mxu0 0
      %773 = vmatpush.bf16.msra.mxu0 0
      %774 = vmatpush.bf16.msra.mxu0 0
      %775 = vmatpush.bf16.msra.mxu0 %v404
      %776 = vmatmul.bf16.gmra.mxu0 %v766
      %v777 = vpop.f32.mrf.mxu0
      %v778 = vadd.f32 0.0, %v777
      %v779 = vpop.f32.mrf.mxu0
      %780 = vdwg.mxu0
      %v783 = vsel %vm484, %v729, 0
      %785 = vmatpush.bf16.msra.mxu0 0
      %786 = vmatpush.bf16.msra.mxu0 0
      %787 = vmatpush.bf16.msra.mxu0 0
      %788 = vmatpush.bf16.msra.mxu0 0
      %789 = vmatpush.bf16.msra.mxu0 0
      %790 = vmatpush.bf16.msra.mxu0 0
      %791 = vmatpush.bf16.msra.mxu0 0
      %792 = vmatpush.bf16.msra.mxu0 %v405
      %793 = vmatmul.bf16.gmra.mxu0 %v783
      %v794 = vpop.f32.mrf.mxu0
      %v795 = vadd.f32 0.0, %v794
      %v796 = vpop.f32.mrf.mxu0
      %797 = vdwg.mxu0
      %v798 = vpack.c.bf16 %v761, %v744
      %v799 = vpack.c.bf16 %v795, %v778
      %v800 = vld [vmem:[%s6] sm:$0xf]
      %v801 = vld [vmem:[%s6 + $0x4] sm:$0xf]
      %v802 = vld [vmem:[%s6 + $0x8] sm:$0xf]
      %v803 = vld [vmem:[%s6 + $0xc] sm:$0xf]
      %v804 = vld [vmem:[%s7] sm:$0x1]
      %v806 = vperm.slane %v804, 0
      %v812 = vunpack.c.l.b16 %v800
      %v813 = vunpack.c.l.b16 %v801
      %v814 = vunpack.c.l.b16 %v802
      %v815 = vunpack.c.l.b16 %v803
      %v816 = vpack.c.b16 %v813, %v812
      %v817 = vpack.c.b16 %v815, %v814
      %v821 = vsel %vm418, %v798, 0
      %v824 = vsel %vm418, %v799, 0
      %826 = vmatpush.bf16.msra.mxu0 0
      %827 = vmatpush.bf16.msra.mxu0 0
      %828 = vmatpush.bf16.msra.mxu0 0
      %829 = vmatpush.bf16.msra.mxu0 0
      %830 = vmatpush.bf16.msra.mxu0 0
      %831 = vmatpush.bf16.msra.mxu0 0
      %832 = vmatpush.bf16.msra.mxu0 %v817
      %833 = vmatpush.bf16.msra.mxu0 %v816
      %834 = vmatmul.bf16.gmra.mxu0 %v821
      %v835 = vpop.f32.mrf.mxu0
      %v836 = vadd.f32 %v806, %v835
      %v837 = vpop.f32.mrf.mxu0
      %v838 = vadd.f32 %v806, %v837
      %839 = vmatmul.bf16.gmra.mxu0 %v824
      %v840 = vpop.f32.mrf.mxu0
      %v841 = vadd.f32 %v806, %v840
      %v842 = vpop.f32.mrf.mxu0
      %v843 = vadd.f32 %v806, %v842
      %844 = vdwg.mxu0
      %845 = vst.msk [vmem:[%s361] sm:$0xff] %vm418, %v836
      %846 = vst.msk [vmem:[%s361 + $0x8] sm:$0xff] %vm418, %v838
      %847 = vst.msk [vmem:[%s361 + $0x10] sm:$0xff] %vm418, %v841
      %848 = vst.msk [vmem:[%s361 + $0x18] sm:$0xff] %vm418, %v843
      %vm849 = vcmask 125952
      %850 = vst.msk [vmem:[%s367] sm:$0xf] %vm849, %v726
      %851 = vst.msk [vmem:[%s367 + $0x4] sm:$0xf] %vm849, %v727
      %852 = vst.msk [vmem:[%s367 + $0x8] sm:$0xf] %vm849, %v728
      %853 = vst.msk [vmem:[%s367 + $0xc] sm:$0xf] %vm849, %v729
      %s854 = smul.u32 4, %s21
      %p855 = scmp.lt.s32.totalorder %s854, 7
      %s856 = scalar_select %p855, %s854, 7
      %s857 = smul.addr %s856, 8
      %s858 = scalar_lea.vmem %s8, %s857
      %s859 = smul.u32 4, %s21
      %p860 = scmp.lt.s32.totalorder %s859, 7
      %s861 = scalar_select %p860, %s859, 7
      %s862 = smul.addr %s861, 4
      %s863 = scalar_lea.vmem %s9, %s862
      // Predicated region
      $region53: #{tpu_custom_call.1} parent=51 // pred_check
        %p864 = pneg %p217
      $region54: #{tpu_custom_call.1} parent=51 // pred_check_branch
        %866 = sbr.rel (%p864) target = $region56
      $region55: #{tpu_custom_call.1} parent=51 // pred_region
        %s867 = smul.u32 4, %s21
      $region56: #{tpu_custom_call.1} parent=51 // pred_fallthru
        _
      // Predicated region
      $region57: #{tpu_custom_call.1} parent=51 // pred_check
        %p868 = pneg %p243
      $region58: #{tpu_custom_call.1} parent=51 // pred_check_branch
        %870 = sbr.rel (%p868) target = $region60
      $region59: #{tpu_custom_call.1} parent=51 // pred_region
        %s871 = smul.u32 4, %s21
      $region60: #{tpu_custom_call.1} parent=51 // pred_fallthru
        _
    $region52: #{tpu_custom_call.1} parent=5 // pred_fallthru
      _
    %p872 = scmp.le.s32.totalorder 2, %s16
    // Predicated region
    $region61: #{tpu_custom_call.1} parent=5 // pred_check
      %p873 = pneg %p872
    $region62: #{tpu_custom_call.1} parent=5 // pred_check_branch
      %875 = sbr.rel (%p873) target = $region64
    $region63: #{tpu_custom_call.1} parent=5 // pred_region
      %s876 = ssub.s32 %s16, 2
      // Predicated region
      $region65: #{tpu_custom_call.1} parent=63 // pred_check
        %p877 = pneg %p223
      $region66: #{tpu_custom_call.1} parent=63 // pred_check_branch
        %879 = sbr.rel (%p877) target = $region68
      $region67: #{tpu_custom_call.1} parent=63 // pred_region
        %s880 = smul.u32 4, %s22
        %p881 = scmp.lt.s32.totalorder %s880, 7
        %s882 = scalar_select %p881, %s880, 7
        %s883 = smul.addr %s882, 8
        %s884 = scalar_lea.vmem %s8, %s883
      $region68: #{tpu_custom_call.1} parent=63 // pred_fallthru
        _
      // Predicated region
      $region69: #{tpu_custom_call.1} parent=63 // pred_check
        %p885 = pneg %p249
      $region70: #{tpu_custom_call.1} parent=63 // pred_check_branch
        %887 = sbr.rel (%p885) target = $region72
      $region71: #{tpu_custom_call.1} parent=63 // pred_region
        %s888 = smul.u32 4, %s22
        %p889 = scmp.lt.s32.totalorder %s888, 7
        %s890 = scalar_select %p889, %s888, 7
        %s891 = smul.addr %s890, 4
        %s892 = scalar_lea.vmem %s9, %s891
      $region72: #{tpu_custom_call.1} parent=63 // pred_fallthru
        _
    $region64: #{tpu_custom_call.1} parent=5 // pred_fallthru
      _
  $region6: #{tpu_custom_call.1} parent=0 // loop_footer
    %s20 = sadd.s32 1, %s16
  $region7: #{tpu_custom_call.1} parent=0 // loop_footer_branch
    %15 = sbr.rel target = $region3
  $region8: #{tpu_custom_call.1} parent=0 // loop_exit
    _

</llo_original>
